<compile_context>
chip_gen: v7x
topology: tpu7x:2x2x1
jax: 0.10.0
libtpu: 0.0.40
codegen_flags: <defaults>
</compile_context>

<pallas_src>
import functools

import numpy as np
import jax
import jax.numpy as jnp
from jax import lax
from jax.experimental import pallas as pl
from jax.experimental.pallas import tpu as pltpu


def _round_up(x, m):
    return (x + m - 1) // m * m


def _pick_t_chunk(n_steps, batch, target_rows=512):
    """Largest divisor of n_steps whose row count (t_chunk*batch) is 16-row aligned
    (safe for a bf16 input block) and <= target_rows. Falls back to the full sequence
    (block == full array, always legal)."""
    best = None
    for d in range(1, n_steps + 1):
        if n_steps % d:
            continue
        rows = d * batch
        if rows % 16 == 0 and rows <= target_rows:
            best = d
    return best if best is not None else n_steps


def _rsnn_kernel(x_ref, w1_ref, b1_ref, w2_ref, b2_ref, out_ref,
                 cur1_scr, s1_scr, cur2_scr, v1_scr, v2_scr,
                 *, tau, batch, t_chunk, n_steps_total, unroll):
    """One grid step = one chunk of `t_chunk` timesteps, rows ordered (t, b)."""
    c = pl.program_id(0)
    B = batch
    inv_tau = jnp.float32(1.0 / tau)

    @pl.when(c == 0)
    def _init():                                   # lif1.reset() / lif2.reset()
        v1_scr[...] = jnp.zeros_like(v1_scr)
        v2_scr[...] = jnp.zeros_like(v2_scr)
        out_ref[...] = jnp.zeros_like(out_ref)

    # ---- Phase 1: fc1 for every (t, b) row of the chunk (single bf16 MXU matmul).
    cur1_scr[...] = (
        jnp.dot(x_ref[...], w1_ref[...], preferred_element_type=jnp.float32)
        + b1_ref[...])

    # ---- Phase 2: LIF1 recurrence (pure VPU); membrane carried in vregs, spike rows
    #      stored into the s1 scratch for the batched fc2 matmul.
    def lif1_step(t, v1):
        r0 = pl.multiple_of(t * B, B)
        for b in range(B):                         # static unroll over batch
            cb = cur1_scr[pl.ds(r0 + b, 1), :]     # (1, H_p)
            h = v1 + (cb - v1) * inv_tau           # charge (decay_input=True)
            s1_scr[pl.ds(r0 + b, 1), :] = (h >= 1.0).astype(jnp.float32)  # fire
            v1 = jnp.where(h >= 1.0, 0.0, h)       # hard reset to v_reset = 0
        return v1

    v1_scr[...] = lax.fori_loop(0, t_chunk, lif1_step, v1_scr[...], unroll=unroll)

    # ---- Phase 3: fc2 for the whole chunk (single bf16 MXU matmul; spikes {0,1} exact).
    cur2_scr[...] = (
        jnp.dot(s1_scr[...].astype(jnp.bfloat16), w2_ref[...],
                preferred_element_type=jnp.float32)
        + b2_ref[...])

    # ---- Phase 4: LIF2 recurrence + spike-rate accumulation, all in vregs.
    cp = cur2_scr.shape[1]

    def lif2_step(t, carry):
        v2, accs = carry
        r0 = pl.multiple_of(t * B, B)
        new_accs = []
        for b in range(B):
            cb = cur2_scr[pl.ds(r0 + b, 1), :]     # (1, C_p)
            h = v2 + (cb - v2) * inv_tau
            new_accs.append(accs[b] + (h >= 1.0).astype(jnp.float32))
            v2 = jnp.where(h >= 1.0, 0.0, h)
        return v2, tuple(new_accs)

    init = (v2_scr[...], tuple(jnp.zeros((1, cp), jnp.float32) for _ in range(B)))
    v2, accs = lax.fori_loop(0, t_chunk, lif2_step, init, unroll=unroll)
    v2_scr[...] = v2
    # spk_rec accumulation: out[b, :] += sum_{t in chunk} s2[t, b, :]   (one RMW per chunk)
    out_ref[...] = out_ref[...] + jnp.concatenate(list(accs), axis=0)

    # spk_tensor.mean(dim=0)
    @pl.when(c == pl.num_programs(0) - 1)
    def _finalize():
        out_ref[...] = out_ref[...] * jnp.float32(1.0 / n_steps_total)
    # TODO(synk): mem_rec (history of lif2.v) is collected in torch but unused by the
    # return value, so it is not materialized here.


def recurrent_classifier_sj_forward(x, params, *, tau, t_chunk=None):
    """x: (B, T, window_size*n_channels) f32; params in torch layout. Returns (B, n_classes)."""
    w1, b1, w2, b2 = params          # w1: (H, Din), b1: (H,), w2: (C, H), b2: (C,)
    B, T, Din = x.shape
    H, C = w1.shape[0], w2.shape[0]

    Din_p = _round_up(Din, 128)
    H_p = _round_up(H, 128)
    C_p = _round_up(C, 128)

    if t_chunk is None:
        t_chunk = _pick_t_chunk(T, B)
    assert T % t_chunk == 0
    n_chunks = T // t_chunk
    R = t_chunk * B                                # rows per grid step

    # (t, b) row ordering; zero-pad to lane-friendly sizes; bf16 for the MXU (values are
    # on the bf16 grid and spikes {0,1} are exact, so numerics are defined at bf16 matmul
    # precision with f32 accumulation).
    x_seq = jnp.transpose(x, (1, 0, 2)).reshape(T * B, Din)
    x_seq = jnp.pad(x_seq, ((0, 0), (0, Din_p - Din))).astype(jnp.bfloat16)
    w1_p = jnp.pad(w1.T, ((0, Din_p - Din), (0, H_p - H))).astype(jnp.bfloat16)
    b1_p = jnp.pad(b1, (0, H_p - H)).reshape(1, H_p).astype(jnp.float32)
    w2_p = jnp.pad(w2.T, ((0, H_p - H), (0, C_p - C))).astype(jnp.bfloat16)
    b2_p = jnp.pad(b2, (0, C_p - C)).reshape(1, C_p).astype(jnp.float32)
    # (zero-padded neurons/classes get zero current + zero bias: never spike, never contribute)

    unroll = True if R <= 64 else 8
    kernel = functools.partial(
        _rsnn_kernel, tau=float(tau), batch=B, t_chunk=t_chunk,
        n_steps_total=T, unroll=unroll)

    flops = 2 * T * B * (Din_p * H_p + H_p * C_p)
    bytes_accessed = (x_seq.size * 2 + w1_p.size * 2 + w2_p.size * 2
                      + (H_p + C_p) * 4 + B * C_p * 4)
    vmem_bytes = (2 * R * Din_p * 2                      # x block (double-buffered, bf16)
                  + Din_p * H_p * 2 + H_p * C_p * 2      # weights (bf16)
                  + (H_p + C_p) * 4                      # biases
                  + 2 * R * H_p * 4 + R * C_p * 4        # cur1 / s1 / cur2 scratch
                  + 2 * B * C_p * 4 + (H_p + C_p) * 4)   # out block + membranes
    vmem_limit = int(max(16 * 2**20, min(2 * vmem_bytes, 100 * 2**20)))

    out = pl.pallas_call(
        kernel,
        out_shape=jax.ShapeDtypeStruct((B, C_p), jnp.float32),
        grid=(n_chunks,),
        in_specs=[
            pl.BlockSpec((R, Din_p), lambda c: (c, 0)),       # x rows of this chunk (pipelined)
            pl.BlockSpec((Din_p, H_p), lambda c: (0, 0)),     # fc1 weight (resident)
            pl.BlockSpec((1, H_p), lambda c: (0, 0)),
            pl.BlockSpec((H_p, C_p), lambda c: (0, 0)),       # fc2 weight (resident)
            pl.BlockSpec((1, C_p), lambda c: (0, 0)),
        ],
        out_specs=pl.BlockSpec((B, C_p), lambda c: (0, 0)),   # resident accumulator
        scratch_shapes=[
            pltpu.VMEM((R, H_p), jnp.float32),   # cur1 (fc1 output) for the chunk
            pltpu.VMEM((R, H_p), jnp.float32),   # s1 spike buffer for the chunk
            pltpu.VMEM((R, C_p), jnp.float32),   # cur2 (fc2 output) for the chunk
            pltpu.VMEM((1, H_p), jnp.float32),   # lif1 membrane (persists across chunks)
            pltpu.VMEM((1, C_p), jnp.float32),   # lif2 membrane (persists across chunks)
        ],
        compiler_params=pltpu.CompilerParams(
            dimension_semantics=("arbitrary",),  # LIF state is serial over chunks
            vmem_limit_bytes=vmem_limit),
        cost_estimate=pl.CostEstimate(
            flops=flops, transcendentals=0, bytes_accessed=bytes_accessed),
    )(x_seq, w1_p, b1_p, w2_p, b2_p)
    return out[:, :C]


def reference_forward(x, params, *, tau):
    """Pure-JAX mirror of the torch forward (same batch-as-LIF-time semantics,
    same bf16-input / f32-accumulate matmul precision as the kernel)."""
    w1, b1, w2, b2 = params
    B, T, Din = x.shape
    H, C = w1.shape[0], w2.shape[0]
    x_seq = jnp.transpose(x, (1, 0, 2)).reshape(T * B, Din)
    cur1 = jnp.dot(x_seq.astype(jnp.bfloat16), w1.T.astype(jnp.bfloat16),
                   preferred_element_type=jnp.float32) + b1
    inv_tau = jnp.float32(1.0 / tau)
    w2_bf = w2.T.astype(jnp.bfloat16)

    def step(carry, c1):
        v1, v2 = carry
        h1 = v1 + (c1 - v1) * inv_tau
        s1 = (h1 >= 1.0).astype(jnp.float32)
        v1 = jnp.where(h1 >= 1.0, 0.0, h1)
        c2 = jnp.dot(s1.astype(jnp.bfloat16), w2_bf,
                     preferred_element_type=jnp.float32) + b2
        h2 = v2 + (c2 - v2) * inv_tau
        s2 = (h2 >= 1.0).astype(jnp.float32)
        v2 = jnp.where(h2 >= 1.0, 0.0, h2)
        return (v1, v2), s2

    (_, _), spk = lax.scan(
        step,
        (jnp.zeros((H,), jnp.float32), jnp.zeros((C,), jnp.float32)),
        cur1)
    return spk.reshape(T, B, C).mean(axis=0)


def _bf16_grid(a):
    # Snap values to the bf16 grid so MXU-precision differences between the Pallas kernel
    # and the JAX reference cannot flip a spike at the threshold.
    return a.astype(jnp.bfloat16).astype(jnp.float32)


if __name__ == "__main__":
    # module hyper-parameters (small, consistent with the torch __init__)
    window_size = 16
    n_spikes_per_timestep = 8
    n_channels = 4
    lif_tau = 2.0
    l1_sz = 32
    n_classes = 4
    num_steps = 8          # present in the module but unused by forward()
    batch = 2
    d_in = window_size * n_channels   # 64

    key = jax.random.PRNGKey(0)
    kx, k1, k2, k3, k4 = jax.random.split(key, 5)

    # deterministic torch-nn.Linear-style init: U(-1/sqrt(fan_in), 1/sqrt(fan_in))
    lim1 = 1.0 / np.sqrt(d_in)
    lim2 = 1.0 / np.sqrt(l1_sz)
    w1 = _bf16_grid(jax.random.uniform(k1, (l1_sz, d_in), jnp.float32, -lim1, lim1))
    b1 = _bf16_grid(jax.random.uniform(k2, (l1_sz,), jnp.float32, -lim1, lim1))
    w2 = _bf16_grid(jax.random.uniform(k3, (n_classes, l1_sz), jnp.float32, -lim2, lim2))
    b2 = _bf16_grid(jax.random.uniform(k4, (n_classes,), jnp.float32, -lim2, lim2))
    params = (w1, b1, w2, b2)

    # inputs scaled so the LIF layers actually spike
    x = _bf16_grid(jax.random.uniform(
        kx, (batch, n_spikes_per_timestep, d_in), jnp.float32, 0.0, 2.0))

    out = jax.block_until_ready(
        recurrent_classifier_sj_forward(x, params, tau=lif_tau))
    ref = jax.block_until_ready(reference_forward(x, params, tau=lif_tau))

    assert out.shape == (batch, n_classes)
    np.testing.assert_allclose(np.asarray(out), np.asarray(ref), atol=1e-5, rtol=1e-5)
    print("KERNEL_OK")
</pallas_src>

<mosaic_0001>
module attributes {stable_mosaic.version = 11 : i64} {
  func.func @_rsnn_kernel(%arg0: i32, %arg1: memref<16x128xbf16, #tpu.memory_space<vmem>>, %arg2: memref<128x128xbf16, #tpu.memory_space<vmem>>, %arg3: memref<1x128xf32, #tpu.memory_space<vmem>>, %arg4: memref<128x128xbf16, #tpu.memory_space<vmem>>, %arg5: memref<1x128xf32, #tpu.memory_space<vmem>>, %arg6: memref<2x128xf32, #tpu.memory_space<vmem>>, %arg7: memref<16x128xf32, #tpu.memory_space<vmem>>, %arg8: memref<16x128xf32, #tpu.memory_space<vmem>>, %arg9: memref<16x128xf32, #tpu.memory_space<vmem>>, %arg10: memref<1x128xf32, #tpu.memory_space<vmem>>, %arg11: memref<1x128xf32, #tpu.memory_space<vmem>>) attributes {dimension_semantics = [#tpu.dimension_semantics<arbitrary>], iteration_bounds = array<i64: 1>, scalar_prefetch = 0 : i64, scratch_operands = 5 : i64, tpu.core_type = #tpu.core_type<tc>, window_params = [{transform_indices = @transform_0, window_bounds = array<i64: 16, 128>}, {pipeline_mode = #tpu.pipeline_mode<synchronous>, transform_indices = @transform_1, window_bounds = array<i64: 128, 128>}, {pipeline_mode = #tpu.pipeline_mode<synchronous>, transform_indices = @transform_2, window_bounds = array<i64: 1, 128>}, {pipeline_mode = #tpu.pipeline_mode<synchronous>, transform_indices = @transform_3, window_bounds = array<i64: 128, 128>}, {pipeline_mode = #tpu.pipeline_mode<synchronous>, transform_indices = @transform_4, window_bounds = array<i64: 1, 128>}, {pipeline_mode = #tpu.pipeline_mode<synchronous>, transform_indices = @transform_5, window_bounds = array<i64: 2, 128>}]} {
    %c0_i32 = arith.constant 0 : i32
    %0 = arith.cmpi eq, %arg0, %c0_i32 : i32
    %1 = arith.extui %0 : i1 to i32
    %c0_i32_0 = arith.constant 0 : i32
    %2 = arith.cmpi ne, %1, %c0_i32_0 : i32
    scf.if %2 {
      %cst_253 = arith.constant 0.000000e+00 : f32
      %607 = vector.broadcast %cst_253 : f32 to vector<1x128xf32>
      %c0_254 = arith.constant 0 : index
      %c0_255 = arith.constant 0 : index
      %608 = vector.load %arg10[%c0_254, %c0_255] : memref<1x128xf32, #tpu.memory_space<vmem>>, vector<1x128xf32>
      tpu.vector_store %arg10[%c0_254, %c0_255], %607 {strides = array<i32>} : memref<1x128xf32, #tpu.memory_space<vmem>>, vector<1x128xf32>,
      %cst_256 = arith.constant 0.000000e+00 : f32
      %609 = vector.broadcast %cst_256 : f32 to vector<1x128xf32>
      %c0_257 = arith.constant 0 : index
      %c0_258 = arith.constant 0 : index
      %610 = vector.load %arg11[%c0_257, %c0_258] : memref<1x128xf32, #tpu.memory_space<vmem>>, vector<1x128xf32>
      tpu.vector_store %arg11[%c0_257, %c0_258], %609 {strides = array<i32>} : memref<1x128xf32, #tpu.memory_space<vmem>>, vector<1x128xf32>,
      %cst_259 = arith.constant 0.000000e+00 : f32
      %611 = vector.broadcast %cst_259 : f32 to vector<2x128xf32>
      %c0_260 = arith.constant 0 : index
      %c0_261 = arith.constant 0 : index
      %612 = vector.load %arg6[%c0_260, %c0_261] : memref<2x128xf32, #tpu.memory_space<vmem>>, vector<2x128xf32>
      tpu.vector_store %arg6[%c0_260, %c0_261], %611 {strides = array<i32>} : memref<2x128xf32, #tpu.memory_space<vmem>>, vector<2x128xf32>,
    } else {
    }
    %c0 = arith.constant 0 : index
    %c0_1 = arith.constant 0 : index
    %3 = vector.load %arg1[%c0, %c0_1] : memref<16x128xbf16, #tpu.memory_space<vmem>>, vector<16x128xbf16>
    %c0_2 = arith.constant 0 : index
    %c0_3 = arith.constant 0 : index
    %4 = vector.load %arg2[%c0_2, %c0_3] : memref<128x128xbf16, #tpu.memory_space<vmem>>, vector<128x128xbf16>
    %cst = arith.constant dense<0.000000e+00> : vector<16x128xf32>
    %5 = tpu.matmul %3, %4, %cst {dimension_numbers = #tpu.dot_dimension_numbers<[1], [0], [0], [1], [0, 0, 1, 1], [], []>} : vector<16x128xbf16>, vector<128x128xbf16>, vector<16x128xf32> -> vector<16x128xf32>
    %c0_4 = arith.constant 0 : index
    %c0_5 = arith.constant 0 : index
    %6 = vector.load %arg3[%c0_4, %c0_5] : memref<1x128xf32, #tpu.memory_space<vmem>>, vector<1x128xf32>
    %7 = vector.broadcast %6 : vector<1x128xf32> to vector<16x128xf32>
    %8 = arith.addf %5, %7 : vector<16x128xf32>
    %c0_6 = arith.constant 0 : index
    %c0_7 = arith.constant 0 : index
    %9 = vector.load %arg7[%c0_6, %c0_7] : memref<16x128xf32, #tpu.memory_space<vmem>>, vector<16x128xf32>
    tpu.vector_store %arg7[%c0_6, %c0_7], %8 {strides = array<i32>} : memref<16x128xf32, #tpu.memory_space<vmem>>, vector<16x128xf32>,
    %c0_8 = arith.constant 0 : index
    %c0_9 = arith.constant 0 : index
    %10 = vector.load %arg10[%c0_8, %c0_9] : memref<1x128xf32, #tpu.memory_space<vmem>>, vector<1x128xf32>
    %cst_10 = arith.constant 5.000000e-01 : f32
    %c0_i32_11 = arith.constant 0 : i32
    %c2_i32 = arith.constant 2 : i32
    %11 = arith.muli %c0_i32_11, %c2_i32 : i32
    %12 = tpu.assume_multiple %11, 2 : i32
    %c0_i32_12 = arith.constant 0 : i32
    %13 = arith.addi %12, %c0_i32_12 : i32
    %14 = arith.index_cast %13 : i32 to index
    %c0_13 = arith.constant 0 : index
    %15 = vector.load %arg7[%14, %c0_13] : memref<16x128xf32, #tpu.memory_space<vmem>>, vector<1x128xf32>
    %16 = arith.subf %15, %10 : vector<1x128xf32>
    %17 = vector.broadcast %cst_10 : f32 to vector<1x128xf32>
    %18 = arith.mulf %16, %17 : vector<1x128xf32>
    %19 = arith.addf %10, %18 : vector<1x128xf32>
    %cst_14 = arith.constant 1.000000e+00 : f32
    %20 = vector.broadcast %cst_14 : f32 to vector<1x128xf32>
    %21 = arith.cmpf oge, %19, %20 : vector<1x128xf32>
    %22 = arith.extui %21 : vector<1x128xi1> to vector<1x128xi32>
    %23 = arith.sitofp %22 : vector<1x128xi32> to vector<1x128xf32>
    %c0_i32_15 = arith.constant 0 : i32
    %24 = arith.addi %12, %c0_i32_15 : i32
    %25 = arith.index_cast %24 : i32 to index
    %c0_16 = arith.constant 0 : index
    %26 = vector.load %arg8[%25, %c0_16] : memref<16x128xf32, #tpu.memory_space<vmem>>, vector<1x128xf32>
    tpu.vector_store %arg8[%25, %c0_16], %23 {strides = array<i32>} : memref<16x128xf32, #tpu.memory_space<vmem>>, vector<1x128xf32>,
    %cst_17 = arith.constant 1.000000e+00 : f32
    %27 = vector.broadcast %cst_17 : f32 to vector<1x128xf32>
    %28 = arith.cmpf oge, %19, %27 : vector<1x128xf32>
    %cst_18 = arith.constant 0.000000e+00 : f32
    %29 = vector.broadcast %cst_18 : f32 to vector<1x128xf32>
    %30 = arith.select %28, %29, %19 : vector<1x128xi1>, vector<1x128xf32>
    %c1_i32 = arith.constant 1 : i32
    %31 = arith.addi %12, %c1_i32 : i32
    %32 = arith.index_cast %31 : i32 to index
    %c0_19 = arith.constant 0 : index
    %33 = vector.load %arg7[%32, %c0_19] : memref<16x128xf32, #tpu.memory_space<vmem>>, vector<1x128xf32>
    %34 = arith.subf %33, %30 : vector<1x128xf32>
    %35 = vector.broadcast %cst_10 : f32 to vector<1x128xf32>
    %36 = arith.mulf %34, %35 : vector<1x128xf32>
    %37 = arith.addf %30, %36 : vector<1x128xf32>
    %cst_20 = arith.constant 1.000000e+00 : f32
    %38 = vector.broadcast %cst_20 : f32 to vector<1x128xf32>
    %39 = arith.cmpf oge, %37, %38 : vector<1x128xf32>
    %40 = arith.extui %39 : vector<1x128xi1> to vector<1x128xi32>
    %41 = arith.sitofp %40 : vector<1x128xi32> to vector<1x128xf32>
    %c1_i32_21 = arith.constant 1 : i32
    %42 = arith.addi %12, %c1_i32_21 : i32
    %43 = arith.index_cast %42 : i32 to index
    %c0_22 = arith.constant 0 : index
    %44 = vector.load %arg8[%43, %c0_22] : memref<16x128xf32, #tpu.memory_space<vmem>>, vector<1x128xf32>
    tpu.vector_store %arg8[%43, %c0_22], %41 {strides = array<i32>} : memref<16x128xf32, #tpu.memory_space<vmem>>, vector<1x128xf32>,
    %cst_23 = arith.constant 1.000000e+00 : f32
    %45 = vector.broadcast %cst_23 : f32 to vector<1x128xf32>
    %46 = arith.cmpf oge, %37, %45 : vector<1x128xf32>
    %cst_24 = arith.constant 0.000000e+00 : f32
    %47 = vector.broadcast %cst_24 : f32 to vector<1x128xf32>
    %48 = arith.select %46, %47, %37 : vector<1x128xi1>, vector<1x128xf32>
    %c1_i32_25 = arith.constant 1 : i32
    %c2_i32_26 = arith.constant 2 : i32
    %49 = arith.muli %c1_i32_25, %c2_i32_26 : i32
    %50 = tpu.assume_multiple %49, 2 : i32
    %c0_i32_27 = arith.constant 0 : i32
    %51 = arith.addi %50, %c0_i32_27 : i32
    %52 = arith.index_cast %51 : i32 to index
    %c0_28 = arith.constant 0 : index
    %53 = vector.load %arg7[%52, %c0_28] : memref<16x128xf32, #tpu.memory_space<vmem>>, vector<1x128xf32>
    %54 = arith.subf %53, %48 : vector<1x128xf32>
    %55 = vector.broadcast %cst_10 : f32 to vector<1x128xf32>
    %56 = arith.mulf %54, %55 : vector<1x128xf32>
    %57 = arith.addf %48, %56 : vector<1x128xf32>
    %cst_29 = arith.constant 1.000000e+00 : f32
    %58 = vector.broadcast %cst_29 : f32 to vector<1x128xf32>
    %59 = arith.cmpf oge, %57, %58 : vector<1x128xf32>
    %60 = arith.extui %59 : vector<1x128xi1> to vector<1x128xi32>
    %61 = arith.sitofp %60 : vector<1x128xi32> to vector<1x128xf32>
    %c0_i32_30 = arith.constant 0 : i32
    %62 = arith.addi %50, %c0_i32_30 : i32
    %63 = arith.index_cast %62 : i32 to index
    %c0_31 = arith.constant 0 : index
    %64 = vector.load %arg8[%63, %c0_31] : memref<16x128xf32, #tpu.memory_space<vmem>>, vector<1x128xf32>
    tpu.vector_store %arg8[%63, %c0_31], %61 {strides = array<i32>} : memref<16x128xf32, #tpu.memory_space<vmem>>, vector<1x128xf32>,
    %cst_32 = arith.constant 1.000000e+00 : f32
    %65 = vector.broadcast %cst_32 : f32 to vector<1x128xf32>
    %66 = arith.cmpf oge, %57, %65 : vector<1x128xf32>
    %cst_33 = arith.constant 0.000000e+00 : f32
    %67 = vector.broadcast %cst_33 : f32 to vector<1x128xf32>
    %68 = arith.select %66, %67, %57 : vector<1x128xi1>, vector<1x128xf32>
    %c1_i32_34 = arith.constant 1 : i32
    %69 = arith.addi %50, %c1_i32_34 : i32
    %70 = arith.index_cast %69 : i32 to index
    %c0_35 = arith.constant 0 : index
    %71 = vector.load %arg7[%70, %c0_35] : memref<16x128xf32, #tpu.memory_space<vmem>>, vector<1x128xf32>
    %72 = arith.subf %71, %68 : vector<1x128xf32>
    %73 = vector.broadcast %cst_10 : f32 to vector<1x128xf32>
    %74 = arith.mulf %72, %73 : vector<1x128xf32>
    %75 = arith.addf %68, %74 : vector<1x128xf32>
    %cst_36 = arith.constant 1.000000e+00 : f32
    %76 = vector.broadcast %cst_36 : f32 to vector<1x128xf32>
    %77 = arith.cmpf oge, %75, %76 : vector<1x128xf32>
    %78 = arith.extui %77 : vector<1x128xi1> to vector<1x128xi32>
    %79 = arith.sitofp %78 : vector<1x128xi32> to vector<1x128xf32>
    %c1_i32_37 = arith.constant 1 : i32
    %80 = arith.addi %50, %c1_i32_37 : i32
    %81 = arith.index_cast %80 : i32 to index
    %c0_38 = arith.constant 0 : index
    %82 = vector.load %arg8[%81, %c0_38] : memref<16x128xf32, #tpu.memory_space<vmem>>, vector<1x128xf32>
    tpu.vector_store %arg8[%81, %c0_38], %79 {strides = array<i32>} : memref<16x128xf32, #tpu.memory_space<vmem>>, vector<1x128xf32>,
    %cst_39 = arith.constant 1.000000e+00 : f32
    %83 = vector.broadcast %cst_39 : f32 to vector<1x128xf32>
    %84 = arith.cmpf oge, %75, %83 : vector<1x128xf32>
    %cst_40 = arith.constant 0.000000e+00 : f32
    %85 = vector.broadcast %cst_40 : f32 to vector<1x128xf32>
    %86 = arith.select %84, %85, %75 : vector<1x128xi1>, vector<1x128xf32>
    %c2_i32_41 = arith.constant 2 : i32
    %c2_i32_42 = arith.constant 2 : i32
    %87 = arith.muli %c2_i32_41, %c2_i32_42 : i32
    %88 = tpu.assume_multiple %87, 2 : i32
    %c0_i32_43 = arith.constant 0 : i32
    %89 = arith.addi %88, %c0_i32_43 : i32
    %90 = arith.index_cast %89 : i32 to index
    %c0_44 = arith.constant 0 : index
    %91 = vector.load %arg7[%90, %c0_44] : memref<16x128xf32, #tpu.memory_space<vmem>>, vector<1x128xf32>
    %92 = arith.subf %91, %86 : vector<1x128xf32>
    %93 = vector.broadcast %cst_10 : f32 to vector<1x128xf32>
    %94 = arith.mulf %92, %93 : vector<1x128xf32>
    %95 = arith.addf %86, %94 : vector<1x128xf32>
    %cst_45 = arith.constant 1.000000e+00 : f32
    %96 = vector.broadcast %cst_45 : f32 to vector<1x128xf32>
    %97 = arith.cmpf oge, %95, %96 : vector<1x128xf32>
    %98 = arith.extui %97 : vector<1x128xi1> to vector<1x128xi32>
    %99 = arith.sitofp %98 : vector<1x128xi32> to vector<1x128xf32>
    %c0_i32_46 = arith.constant 0 : i32
    %100 = arith.addi %88, %c0_i32_46 : i32
    %101 = arith.index_cast %100 : i32 to index
    %c0_47 = arith.constant 0 : index
    %102 = vector.load %arg8[%101, %c0_47] : memref<16x128xf32, #tpu.memory_space<vmem>>, vector<1x128xf32>
    tpu.vector_store %arg8[%101, %c0_47], %99 {strides = array<i32>} : memref<16x128xf32, #tpu.memory_space<vmem>>, vector<1x128xf32>,
    %cst_48 = arith.constant 1.000000e+00 : f32
    %103 = vector.broadcast %cst_48 : f32 to vector<1x128xf32>
    %104 = arith.cmpf oge, %95, %103 : vector<1x128xf32>
    %cst_49 = arith.constant 0.000000e+00 : f32
    %105 = vector.broadcast %cst_49 : f32 to vector<1x128xf32>
    %106 = arith.select %104, %105, %95 : vector<1x128xi1>, vector<1x128xf32>
    %c1_i32_50 = arith.constant 1 : i32
    %107 = arith.addi %88, %c1_i32_50 : i32
    %108 = arith.index_cast %107 : i32 to index
    %c0_51 = arith.constant 0 : index
    %109 = vector.load %arg7[%108, %c0_51] : memref<16x128xf32, #tpu.memory_space<vmem>>, vector<1x128xf32>
    %110 = arith.subf %109, %106 : vector<1x128xf32>
    %111 = vector.broadcast %cst_10 : f32 to vector<1x128xf32>
    %112 = arith.mulf %110, %111 : vector<1x128xf32>
    %113 = arith.addf %106, %112 : vector<1x128xf32>
    %cst_52 = arith.constant 1.000000e+00 : f32
    %114 = vector.broadcast %cst_52 : f32 to vector<1x128xf32>
    %115 = arith.cmpf oge, %113, %114 : vector<1x128xf32>
    %116 = arith.extui %115 : vector<1x128xi1> to vector<1x128xi32>
    %117 = arith.sitofp %116 : vector<1x128xi32> to vector<1x128xf32>
    %c1_i32_53 = arith.constant 1 : i32
    %118 = arith.addi %88, %c1_i32_53 : i32
    %119 = arith.index_cast %118 : i32 to index
    %c0_54 = arith.constant 0 : index
    %120 = vector.load %arg8[%119, %c0_54] : memref<16x128xf32, #tpu.memory_space<vmem>>, vector<1x128xf32>
    tpu.vector_store %arg8[%119, %c0_54], %117 {strides = array<i32>} : memref<16x128xf32, #tpu.memory_space<vmem>>, vector<1x128xf32>,
    %cst_55 = arith.constant 1.000000e+00 : f32
    %121 = vector.broadcast %cst_55 : f32 to vector<1x128xf32>
    %122 = arith.cmpf oge, %113, %121 : vector<1x128xf32>
    %cst_56 = arith.constant 0.000000e+00 : f32
    %123 = vector.broadcast %cst_56 : f32 to vector<1x128xf32>
    %124 = arith.select %122, %123, %113 : vector<1x128xi1>, vector<1x128xf32>
    %c3_i32 = arith.constant 3 : i32
    %c2_i32_57 = arith.constant 2 : i32
    %125 = arith.muli %c3_i32, %c2_i32_57 : i32
    %126 = tpu.assume_multiple %125, 2 : i32
    %c0_i32_58 = arith.constant 0 : i32
    %127 = arith.addi %126, %c0_i32_58 : i32
    %128 = arith.index_cast %127 : i32 to index
    %c0_59 = arith.constant 0 : index
    %129 = vector.load %arg7[%128, %c0_59] : memref<16x128xf32, #tpu.memory_space<vmem>>, vector<1x128xf32>
    %130 = arith.subf %129, %124 : vector<1x128xf32>
    %131 = vector.broadcast %cst_10 : f32 to vector<1x128xf32>
    %132 = arith.mulf %130, %131 : vector<1x128xf32>
    %133 = arith.addf %124, %132 : vector<1x128xf32>
    %cst_60 = arith.constant 1.000000e+00 : f32
    %134 = vector.broadcast %cst_60 : f32 to vector<1x128xf32>
    %135 = arith.cmpf oge, %133, %134 : vector<1x128xf32>
    %136 = arith.extui %135 : vector<1x128xi1> to vector<1x128xi32>
    %137 = arith.sitofp %136 : vector<1x128xi32> to vector<1x128xf32>
    %c0_i32_61 = arith.constant 0 : i32
    %138 = arith.addi %126, %c0_i32_61 : i32
    %139 = arith.index_cast %138 : i32 to index
    %c0_62 = arith.constant 0 : index
    %140 = vector.load %arg8[%139, %c0_62] : memref<16x128xf32, #tpu.memory_space<vmem>>, vector<1x128xf32>
    tpu.vector_store %arg8[%139, %c0_62], %137 {strides = array<i32>} : memref<16x128xf32, #tpu.memory_space<vmem>>, vector<1x128xf32>,
    %cst_63 = arith.constant 1.000000e+00 : f32
    %141 = vector.broadcast %cst_63 : f32 to vector<1x128xf32>
    %142 = arith.cmpf oge, %133, %141 : vector<1x128xf32>
    %cst_64 = arith.constant 0.000000e+00 : f32
    %143 = vector.broadcast %cst_64 : f32 to vector<1x128xf32>
    %144 = arith.select %142, %143, %133 : vector<1x128xi1>, vector<1x128xf32>
    %c1_i32_65 = arith.constant 1 : i32
    %145 = arith.addi %126, %c1_i32_65 : i32
    %146 = arith.index_cast %145 : i32 to index
    %c0_66 = arith.constant 0 : index
    %147 = vector.load %arg7[%146, %c0_66] : memref<16x128xf32, #tpu.memory_space<vmem>>, vector<1x128xf32>
    %148 = arith.subf %147, %144 : vector<1x128xf32>
    %149 = vector.broadcast %cst_10 : f32 to vector<1x128xf32>
    %150 = arith.mulf %148, %149 : vector<1x128xf32>
    %151 = arith.addf %144, %150 : vector<1x128xf32>
    %cst_67 = arith.constant 1.000000e+00 : f32
    %152 = vector.broadcast %cst_67 : f32 to vector<1x128xf32>
    %153 = arith.cmpf oge, %151, %152 : vector<1x128xf32>
    %154 = arith.extui %153 : vector<1x128xi1> to vector<1x128xi32>
    %155 = arith.sitofp %154 : vector<1x128xi32> to vector<1x128xf32>
    %c1_i32_68 = arith.constant 1 : i32
    %156 = arith.addi %126, %c1_i32_68 : i32
    %157 = arith.index_cast %156 : i32 to index
    %c0_69 = arith.constant 0 : index
    %158 = vector.load %arg8[%157, %c0_69] : memref<16x128xf32, #tpu.memory_space<vmem>>, vector<1x128xf32>
    tpu.vector_store %arg8[%157, %c0_69], %155 {strides = array<i32>} : memref<16x128xf32, #tpu.memory_space<vmem>>, vector<1x128xf32>,
    %cst_70 = arith.constant 1.000000e+00 : f32
    %159 = vector.broadcast %cst_70 : f32 to vector<1x128xf32>
    %160 = arith.cmpf oge, %151, %159 : vector<1x128xf32>
    %cst_71 = arith.constant 0.000000e+00 : f32
    %161 = vector.broadcast %cst_71 : f32 to vector<1x128xf32>
    %162 = arith.select %160, %161, %151 : vector<1x128xi1>, vector<1x128xf32>
    %c4_i32 = arith.constant 4 : i32
    %c2_i32_72 = arith.constant 2 : i32
    %163 = arith.muli %c4_i32, %c2_i32_72 : i32
    %164 = tpu.assume_multiple %163, 2 : i32
    %c0_i32_73 = arith.constant 0 : i32
    %165 = arith.addi %164, %c0_i32_73 : i32
    %166 = arith.index_cast %165 : i32 to index
    %c0_74 = arith.constant 0 : index
    %167 = vector.load %arg7[%166, %c0_74] : memref<16x128xf32, #tpu.memory_space<vmem>>, vector<1x128xf32>
    %168 = arith.subf %167, %162 : vector<1x128xf32>
    %169 = vector.broadcast %cst_10 : f32 to vector<1x128xf32>
    %170 = arith.mulf %168, %169 : vector<1x128xf32>
    %171 = arith.addf %162, %170 : vector<1x128xf32>
    %cst_75 = arith.constant 1.000000e+00 : f32
    %172 = vector.broadcast %cst_75 : f32 to vector<1x128xf32>
    %173 = arith.cmpf oge, %171, %172 : vector<1x128xf32>
    %174 = arith.extui %173 : vector<1x128xi1> to vector<1x128xi32>
    %175 = arith.sitofp %174 : vector<1x128xi32> to vector<1x128xf32>
    %c0_i32_76 = arith.constant 0 : i32
    %176 = arith.addi %164, %c0_i32_76 : i32
    %177 = arith.index_cast %176 : i32 to index
    %c0_77 = arith.constant 0 : index
    %178 = vector.load %arg8[%177, %c0_77] : memref<16x128xf32, #tpu.memory_space<vmem>>, vector<1x128xf32>
    tpu.vector_store %arg8[%177, %c0_77], %175 {strides = array<i32>} : memref<16x128xf32, #tpu.memory_space<vmem>>, vector<1x128xf32>,
    %cst_78 = arith.constant 1.000000e+00 : f32
    %179 = vector.broadcast %cst_78 : f32 to vector<1x128xf32>
    %180 = arith.cmpf oge, %171, %179 : vector<1x128xf32>
    %cst_79 = arith.constant 0.000000e+00 : f32
    %181 = vector.broadcast %cst_79 : f32 to vector<1x128xf32>
    %182 = arith.select %180, %181, %171 : vector<1x128xi1>, vector<1x128xf32>
    %c1_i32_80 = arith.constant 1 : i32
    %183 = arith.addi %164, %c1_i32_80 : i32
    %184 = arith.index_cast %183 : i32 to index
    %c0_81 = arith.constant 0 : index
    %185 = vector.load %arg7[%184, %c0_81] : memref<16x128xf32, #tpu.memory_space<vmem>>, vector<1x128xf32>
    %186 = arith.subf %185, %182 : vector<1x128xf32>
    %187 = vector.broadcast %cst_10 : f32 to vector<1x128xf32>
    %188 = arith.mulf %186, %187 : vector<1x128xf32>
    %189 = arith.addf %182, %188 : vector<1x128xf32>
    %cst_82 = arith.constant 1.000000e+00 : f32
    %190 = vector.broadcast %cst_82 : f32 to vector<1x128xf32>
    %191 = arith.cmpf oge, %189, %190 : vector<1x128xf32>
    %192 = arith.extui %191 : vector<1x128xi1> to vector<1x128xi32>
    %193 = arith.sitofp %192 : vector<1x128xi32> to vector<1x128xf32>
    %c1_i32_83 = arith.constant 1 : i32
    %194 = arith.addi %164, %c1_i32_83 : i32
    %195 = arith.index_cast %194 : i32 to index
    %c0_84 = arith.constant 0 : index
    %196 = vector.load %arg8[%195, %c0_84] : memref<16x128xf32, #tpu.memory_space<vmem>>, vector<1x128xf32>
    tpu.vector_store %arg8[%195, %c0_84], %193 {strides = array<i32>} : memref<16x128xf32, #tpu.memory_space<vmem>>, vector<1x128xf32>,
    %cst_85 = arith.constant 1.000000e+00 : f32
    %197 = vector.broadcast %cst_85 : f32 to vector<1x128xf32>
    %198 = arith.cmpf oge, %189, %197 : vector<1x128xf32>
    %cst_86 = arith.constant 0.000000e+00 : f32
    %199 = vector.broadcast %cst_86 : f32 to vector<1x128xf32>
    %200 = arith.select %198, %199, %189 : vector<1x128xi1>, vector<1x128xf32>
    %c5_i32 = arith.constant 5 : i32
    %c2_i32_87 = arith.constant 2 : i32
    %201 = arith.muli %c5_i32, %c2_i32_87 : i32
    %202 = tpu.assume_multiple %201, 2 : i32
    %c0_i32_88 = arith.constant 0 : i32
    %203 = arith.addi %202, %c0_i32_88 : i32
    %204 = arith.index_cast %203 : i32 to index
    %c0_89 = arith.constant 0 : index
    %205 = vector.load %arg7[%204, %c0_89] : memref<16x128xf32, #tpu.memory_space<vmem>>, vector<1x128xf32>
    %206 = arith.subf %205, %200 : vector<1x128xf32>
    %207 = vector.broadcast %cst_10 : f32 to vector<1x128xf32>
    %208 = arith.mulf %206, %207 : vector<1x128xf32>
    %209 = arith.addf %200, %208 : vector<1x128xf32>
    %cst_90 = arith.constant 1.000000e+00 : f32
    %210 = vector.broadcast %cst_90 : f32 to vector<1x128xf32>
    %211 = arith.cmpf oge, %209, %210 : vector<1x128xf32>
    %212 = arith.extui %211 : vector<1x128xi1> to vector<1x128xi32>
    %213 = arith.sitofp %212 : vector<1x128xi32> to vector<1x128xf32>
    %c0_i32_91 = arith.constant 0 : i32
    %214 = arith.addi %202, %c0_i32_91 : i32
    %215 = arith.index_cast %214 : i32 to index
    %c0_92 = arith.constant 0 : index
    %216 = vector.load %arg8[%215, %c0_92] : memref<16x128xf32, #tpu.memory_space<vmem>>, vector<1x128xf32>
    tpu.vector_store %arg8[%215, %c0_92], %213 {strides = array<i32>} : memref<16x128xf32, #tpu.memory_space<vmem>>, vector<1x128xf32>,
    %cst_93 = arith.constant 1.000000e+00 : f32
    %217 = vector.broadcast %cst_93 : f32 to vector<1x128xf32>
    %218 = arith.cmpf oge, %209, %217 : vector<1x128xf32>
    %cst_94 = arith.constant 0.000000e+00 : f32
    %219 = vector.broadcast %cst_94 : f32 to vector<1x128xf32>
    %220 = arith.select %218, %219, %209 : vector<1x128xi1>, vector<1x128xf32>
    %c1_i32_95 = arith.constant 1 : i32
    %221 = arith.addi %202, %c1_i32_95 : i32
    %222 = arith.index_cast %221 : i32 to index
    %c0_96 = arith.constant 0 : index
    %223 = vector.load %arg7[%222, %c0_96] : memref<16x128xf32, #tpu.memory_space<vmem>>, vector<1x128xf32>
    %224 = arith.subf %223, %220 : vector<1x128xf32>
    %225 = vector.broadcast %cst_10 : f32 to vector<1x128xf32>
    %226 = arith.mulf %224, %225 : vector<1x128xf32>
    %227 = arith.addf %220, %226 : vector<1x128xf32>
    %cst_97 = arith.constant 1.000000e+00 : f32
    %228 = vector.broadcast %cst_97 : f32 to vector<1x128xf32>
    %229 = arith.cmpf oge, %227, %228 : vector<1x128xf32>
    %230 = arith.extui %229 : vector<1x128xi1> to vector<1x128xi32>
    %231 = arith.sitofp %230 : vector<1x128xi32> to vector<1x128xf32>
    %c1_i32_98 = arith.constant 1 : i32
    %232 = arith.addi %202, %c1_i32_98 : i32
    %233 = arith.index_cast %232 : i32 to index
    %c0_99 = arith.constant 0 : index
    %234 = vector.load %arg8[%233, %c0_99] : memref<16x128xf32, #tpu.memory_space<vmem>>, vector<1x128xf32>
    tpu.vector_store %arg8[%233, %c0_99], %231 {strides = array<i32>} : memref<16x128xf32, #tpu.memory_space<vmem>>, vector<1x128xf32>,
    %cst_100 = arith.constant 1.000000e+00 : f32
    %235 = vector.broadcast %cst_100 : f32 to vector<1x128xf32>
    %236 = arith.cmpf oge, %227, %235 : vector<1x128xf32>
    %cst_101 = arith.constant 0.000000e+00 : f32
    %237 = vector.broadcast %cst_101 : f32 to vector<1x128xf32>
    %238 = arith.select %236, %237, %227 : vector<1x128xi1>, vector<1x128xf32>
    %c6_i32 = arith.constant 6 : i32
    %c2_i32_102 = arith.constant 2 : i32
    %239 = arith.muli %c6_i32, %c2_i32_102 : i32
    %240 = tpu.assume_multiple %239, 2 : i32
    %c0_i32_103 = arith.constant 0 : i32
    %241 = arith.addi %240, %c0_i32_103 : i32
    %242 = arith.index_cast %241 : i32 to index
    %c0_104 = arith.constant 0 : index
    %243 = vector.load %arg7[%242, %c0_104] : memref<16x128xf32, #tpu.memory_space<vmem>>, vector<1x128xf32>
    %244 = arith.subf %243, %238 : vector<1x128xf32>
    %245 = vector.broadcast %cst_10 : f32 to vector<1x128xf32>
    %246 = arith.mulf %244, %245 : vector<1x128xf32>
    %247 = arith.addf %238, %246 : vector<1x128xf32>
    %cst_105 = arith.constant 1.000000e+00 : f32
    %248 = vector.broadcast %cst_105 : f32 to vector<1x128xf32>
    %249 = arith.cmpf oge, %247, %248 : vector<1x128xf32>
    %250 = arith.extui %249 : vector<1x128xi1> to vector<1x128xi32>
    %251 = arith.sitofp %250 : vector<1x128xi32> to vector<1x128xf32>
    %c0_i32_106 = arith.constant 0 : i32
    %252 = arith.addi %240, %c0_i32_106 : i32
    %253 = arith.index_cast %252 : i32 to index
    %c0_107 = arith.constant 0 : index
    %254 = vector.load %arg8[%253, %c0_107] : memref<16x128xf32, #tpu.memory_space<vmem>>, vector<1x128xf32>
    tpu.vector_store %arg8[%253, %c0_107], %251 {strides = array<i32>} : memref<16x128xf32, #tpu.memory_space<vmem>>, vector<1x128xf32>,
    %cst_108 = arith.constant 1.000000e+00 : f32
    %255 = vector.broadcast %cst_108 : f32 to vector<1x128xf32>
    %256 = arith.cmpf oge, %247, %255 : vector<1x128xf32>
    %cst_109 = arith.constant 0.000000e+00 : f32
    %257 = vector.broadcast %cst_109 : f32 to vector<1x128xf32>
    %258 = arith.select %256, %257, %247 : vector<1x128xi1>, vector<1x128xf32>
    %c1_i32_110 = arith.constant 1 : i32
    %259 = arith.addi %240, %c1_i32_110 : i32
    %260 = arith.index_cast %259 : i32 to index
    %c0_111 = arith.constant 0 : index
    %261 = vector.load %arg7[%260, %c0_111] : memref<16x128xf32, #tpu.memory_space<vmem>>, vector<1x128xf32>
    %262 = arith.subf %261, %258 : vector<1x128xf32>
    %263 = vector.broadcast %cst_10 : f32 to vector<1x128xf32>
    %264 = arith.mulf %262, %263 : vector<1x128xf32>
    %265 = arith.addf %258, %264 : vector<1x128xf32>
    %cst_112 = arith.constant 1.000000e+00 : f32
    %266 = vector.broadcast %cst_112 : f32 to vector<1x128xf32>
    %267 = arith.cmpf oge, %265, %266 : vector<1x128xf32>
    %268 = arith.extui %267 : vector<1x128xi1> to vector<1x128xi32>
    %269 = arith.sitofp %268 : vector<1x128xi32> to vector<1x128xf32>
    %c1_i32_113 = arith.constant 1 : i32
    %270 = arith.addi %240, %c1_i32_113 : i32
    %271 = arith.index_cast %270 : i32 to index
    %c0_114 = arith.constant 0 : index
    %272 = vector.load %arg8[%271, %c0_114] : memref<16x128xf32, #tpu.memory_space<vmem>>, vector<1x128xf32>
    tpu.vector_store %arg8[%271, %c0_114], %269 {strides = array<i32>} : memref<16x128xf32, #tpu.memory_space<vmem>>, vector<1x128xf32>,
    %cst_115 = arith.constant 1.000000e+00 : f32
    %273 = vector.broadcast %cst_115 : f32 to vector<1x128xf32>
    %274 = arith.cmpf oge, %265, %273 : vector<1x128xf32>
    %cst_116 = arith.constant 0.000000e+00 : f32
    %275 = vector.broadcast %cst_116 : f32 to vector<1x128xf32>
    %276 = arith.select %274, %275, %265 : vector<1x128xi1>, vector<1x128xf32>
    %c7_i32 = arith.constant 7 : i32
    %c2_i32_117 = arith.constant 2 : i32
    %277 = arith.muli %c7_i32, %c2_i32_117 : i32
    %278 = tpu.assume_multiple %277, 2 : i32
    %c0_i32_118 = arith.constant 0 : i32
    %279 = arith.addi %278, %c0_i32_118 : i32
    %280 = arith.index_cast %279 : i32 to index
    %c0_119 = arith.constant 0 : index
    %281 = vector.load %arg7[%280, %c0_119] : memref<16x128xf32, #tpu.memory_space<vmem>>, vector<1x128xf32>
    %282 = arith.subf %281, %276 : vector<1x128xf32>
    %283 = vector.broadcast %cst_10 : f32 to vector<1x128xf32>
    %284 = arith.mulf %282, %283 : vector<1x128xf32>
    %285 = arith.addf %276, %284 : vector<1x128xf32>
    %cst_120 = arith.constant 1.000000e+00 : f32
    %286 = vector.broadcast %cst_120 : f32 to vector<1x128xf32>
    %287 = arith.cmpf oge, %285, %286 : vector<1x128xf32>
    %288 = arith.extui %287 : vector<1x128xi1> to vector<1x128xi32>
    %289 = arith.sitofp %288 : vector<1x128xi32> to vector<1x128xf32>
    %c0_i32_121 = arith.constant 0 : i32
    %290 = arith.addi %278, %c0_i32_121 : i32
    %291 = arith.index_cast %290 : i32 to index
    %c0_122 = arith.constant 0 : index
    %292 = vector.load %arg8[%291, %c0_122] : memref<16x128xf32, #tpu.memory_space<vmem>>, vector<1x128xf32>
    tpu.vector_store %arg8[%291, %c0_122], %289 {strides = array<i32>} : memref<16x128xf32, #tpu.memory_space<vmem>>, vector<1x128xf32>,
    %cst_123 = arith.constant 1.000000e+00 : f32
    %293 = vector.broadcast %cst_123 : f32 to vector<1x128xf32>
    %294 = arith.cmpf oge, %285, %293 : vector<1x128xf32>
    %cst_124 = arith.constant 0.000000e+00 : f32
    %295 = vector.broadcast %cst_124 : f32 to vector<1x128xf32>
    %296 = arith.select %294, %295, %285 : vector<1x128xi1>, vector<1x128xf32>
    %c1_i32_125 = arith.constant 1 : i32
    %297 = arith.addi %278, %c1_i32_125 : i32
    %298 = arith.index_cast %297 : i32 to index
    %c0_126 = arith.constant 0 : index
    %299 = vector.load %arg7[%298, %c0_126] : memref<16x128xf32, #tpu.memory_space<vmem>>, vector<1x128xf32>
    %300 = arith.subf %299, %296 : vector<1x128xf32>
    %301 = vector.broadcast %cst_10 : f32 to vector<1x128xf32>
    %302 = arith.mulf %300, %301 : vector<1x128xf32>
    %303 = arith.addf %296, %302 : vector<1x128xf32>
    %cst_127 = arith.constant 1.000000e+00 : f32
    %304 = vector.broadcast %cst_127 : f32 to vector<1x128xf32>
    %305 = arith.cmpf oge, %303, %304 : vector<1x128xf32>
    %306 = arith.extui %305 : vector<1x128xi1> to vector<1x128xi32>
    %307 = arith.sitofp %306 : vector<1x128xi32> to vector<1x128xf32>
    %c1_i32_128 = arith.constant 1 : i32
    %308 = arith.addi %278, %c1_i32_128 : i32
    %309 = arith.index_cast %308 : i32 to index
    %c0_129 = arith.constant 0 : index
    %310 = vector.load %arg8[%309, %c0_129] : memref<16x128xf32, #tpu.memory_space<vmem>>, vector<1x128xf32>
    tpu.vector_store %arg8[%309, %c0_129], %307 {strides = array<i32>} : memref<16x128xf32, #tpu.memory_space<vmem>>, vector<1x128xf32>,
    %cst_130 = arith.constant 1.000000e+00 : f32
    %311 = vector.broadcast %cst_130 : f32 to vector<1x128xf32>
    %312 = arith.cmpf oge, %303, %311 : vector<1x128xf32>
    %cst_131 = arith.constant 0.000000e+00 : f32
    %313 = vector.broadcast %cst_131 : f32 to vector<1x128xf32>
    %314 = arith.select %312, %313, %303 : vector<1x128xi1>, vector<1x128xf32>
    %c8_i32 = arith.constant 8 : i32
    %c0_132 = arith.constant 0 : index
    %c0_133 = arith.constant 0 : index
    %315 = vector.load %arg10[%c0_132, %c0_133] : memref<1x128xf32, #tpu.memory_space<vmem>>, vector<1x128xf32>
    tpu.vector_store %arg10[%c0_132, %c0_133], %314 {strides = array<i32>} : memref<1x128xf32, #tpu.memory_space<vmem>>, vector<1x128xf32>,
    %c0_134 = arith.constant 0 : index
    %c0_135 = arith.constant 0 : index
    %316 = vector.load %arg8[%c0_134, %c0_135] : memref<16x128xf32, #tpu.memory_space<vmem>>, vector<16x128xf32>
    %317 = arith.truncf %316 : vector<16x128xf32> to vector<16x128xbf16>
    %c0_136 = arith.constant 0 : index
    %c0_137 = arith.constant 0 : index
    %318 = vector.load %arg4[%c0_136, %c0_137] : memref<128x128xbf16, #tpu.memory_space<vmem>>, vector<128x128xbf16>
    %cst_138 = arith.constant dense<0.000000e+00> : vector<16x128xf32>
    %319 = tpu.matmul %317, %318, %cst_138 {dimension_numbers = #tpu.dot_dimension_numbers<[1], [0], [0], [1], [0, 0, 1, 1], [], []>} : vector<16x128xbf16>, vector<128x128xbf16>, vector<16x128xf32> -> vector<16x128xf32>
    %c0_139 = arith.constant 0 : index
    %c0_140 = arith.constant 0 : index
    %320 = vector.load %arg5[%c0_139, %c0_140] : memref<1x128xf32, #tpu.memory_space<vmem>>, vector<1x128xf32>
    %321 = vector.broadcast %320 : vector<1x128xf32> to vector<16x128xf32>
    %322 = arith.addf %319, %321 : vector<16x128xf32>
    %c0_141 = arith.constant 0 : index
    %c0_142 = arith.constant 0 : index
    %323 = vector.load %arg9[%c0_141, %c0_142] : memref<16x128xf32, #tpu.memory_space<vmem>>, vector<16x128xf32>
    tpu.vector_store %arg9[%c0_141, %c0_142], %322 {strides = array<i32>} : memref<16x128xf32, #tpu.memory_space<vmem>>, vector<16x128xf32>,
    %c0_143 = arith.constant 0 : index
    %c0_144 = arith.constant 0 : index
    %324 = vector.load %arg11[%c0_143, %c0_144] : memref<1x128xf32, #tpu.memory_space<vmem>>, vector<1x128xf32>
    %cst_145 = arith.constant 0.000000e+00 : f32
    %325 = vector.broadcast %cst_145 : f32 to vector<1x128xf32>
    %cst_146 = arith.constant 0.000000e+00 : f32
    %326 = vector.broadcast %cst_146 : f32 to vector<1x128xf32>
    %cst_147 = arith.constant 5.000000e-01 : f32
    %c0_i32_148 = arith.constant 0 : i32
    %c2_i32_149 = arith.constant 2 : i32
    %327 = arith.muli %c0_i32_148, %c2_i32_149 : i32
    %328 = tpu.assume_multiple %327, 2 : i32
    %c0_i32_150 = arith.constant 0 : i32
    %329 = arith.addi %328, %c0_i32_150 : i32
    %330 = arith.index_cast %329 : i32 to index
    %c0_151 = arith.constant 0 : index
    %331 = vector.load %arg9[%330, %c0_151] : memref<16x128xf32, #tpu.memory_space<vmem>>, vector<1x128xf32>
    %332 = arith.subf %331, %324 : vector<1x128xf32>
    %333 = vector.broadcast %cst_147 : f32 to vector<1x128xf32>
    %334 = arith.mulf %332, %333 : vector<1x128xf32>
    %335 = arith.addf %324, %334 : vector<1x128xf32>
    %cst_152 = arith.constant 1.000000e+00 : f32
    %336 = vector.broadcast %cst_152 : f32 to vector<1x128xf32>
    %337 = arith.cmpf oge, %335, %336 : vector<1x128xf32>
    %338 = arith.extui %337 : vector<1x128xi1> to vector<1x128xi32>
    %339 = arith.sitofp %338 : vector<1x128xi32> to vector<1x128xf32>
    %340 = arith.addf %325, %339 : vector<1x128xf32>
    %cst_153 = arith.constant 1.000000e+00 : f32
    %341 = vector.broadcast %cst_153 : f32 to vector<1x128xf32>
    %342 = arith.cmpf oge, %335, %341 : vector<1x128xf32>
    %cst_154 = arith.constant 0.000000e+00 : f32
    %343 = vector.broadcast %cst_154 : f32 to vector<1x128xf32>
    %344 = arith.select %342, %343, %335 : vector<1x128xi1>, vector<1x128xf32>
    %c1_i32_155 = arith.constant 1 : i32
    %345 = arith.addi %328, %c1_i32_155 : i32
    %346 = arith.index_cast %345 : i32 to index
    %c0_156 = arith.constant 0 : index
    %347 = vector.load %arg9[%346, %c0_156] : memref<16x128xf32, #tpu.memory_space<vmem>>, vector<1x128xf32>
    %348 = arith.subf %347, %344 : vector<1x128xf32>
    %349 = vector.broadcast %cst_147 : f32 to vector<1x128xf32>
    %350 = arith.mulf %348, %349 : vector<1x128xf32>
    %351 = arith.addf %344, %350 : vector<1x128xf32>
    %cst_157 = arith.constant 1.000000e+00 : f32
    %352 = vector.broadcast %cst_157 : f32 to vector<1x128xf32>
    %353 = arith.cmpf oge, %351, %352 : vector<1x128xf32>
    %354 = arith.extui %353 : vector<1x128xi1> to vector<1x128xi32>
    %355 = arith.sitofp %354 : vector<1x128xi32> to vector<1x128xf32>
    %356 = arith.addf %326, %355 : vector<1x128xf32>
    %cst_158 = arith.constant 1.000000e+00 : f32
    %357 = vector.broadcast %cst_158 : f32 to vector<1x128xf32>
    %358 = arith.cmpf oge, %351, %357 : vector<1x128xf32>
    %cst_159 = arith.constant 0.000000e+00 : f32
    %359 = vector.broadcast %cst_159 : f32 to vector<1x128xf32>
    %360 = arith.select %358, %359, %351 : vector<1x128xi1>, vector<1x128xf32>
    %c1_i32_160 = arith.constant 1 : i32
    %c2_i32_161 = arith.constant 2 : i32
    %361 = arith.muli %c1_i32_160, %c2_i32_161 : i32
    %362 = tpu.assume_multiple %361, 2 : i32
    %c0_i32_162 = arith.constant 0 : i32
    %363 = arith.addi %362, %c0_i32_162 : i32
    %364 = arith.index_cast %363 : i32 to index
    %c0_163 = arith.constant 0 : index
    %365 = vector.load %arg9[%364, %c0_163] : memref<16x128xf32, #tpu.memory_space<vmem>>, vector<1x128xf32>
    %366 = arith.subf %365, %360 : vector<1x128xf32>
    %367 = vector.broadcast %cst_147 : f32 to vector<1x128xf32>
    %368 = arith.mulf %366, %367 : vector<1x128xf32>
    %369 = arith.addf %360, %368 : vector<1x128xf32>
    %cst_164 = arith.constant 1.000000e+00 : f32
    %370 = vector.broadcast %cst_164 : f32 to vector<1x128xf32>
    %371 = arith.cmpf oge, %369, %370 : vector<1x128xf32>
    %372 = arith.extui %371 : vector<1x128xi1> to vector<1x128xi32>
    %373 = arith.sitofp %372 : vector<1x128xi32> to vector<1x128xf32>
    %374 = arith.addf %340, %373 : vector<1x128xf32>
    %cst_165 = arith.constant 1.000000e+00 : f32
    %375 = vector.broadcast %cst_165 : f32 to vector<1x128xf32>
    %376 = arith.cmpf oge, %369, %375 : vector<1x128xf32>
    %cst_166 = arith.constant 0.000000e+00 : f32
    %377 = vector.broadcast %cst_166 : f32 to vector<1x128xf32>
    %378 = arith.select %376, %377, %369 : vector<1x128xi1>, vector<1x128xf32>
    %c1_i32_167 = arith.constant 1 : i32
    %379 = arith.addi %362, %c1_i32_167 : i32
    %380 = arith.index_cast %379 : i32 to index
    %c0_168 = arith.constant 0 : index
    %381 = vector.load %arg9[%380, %c0_168] : memref<16x128xf32, #tpu.memory_space<vmem>>, vector<1x128xf32>
    %382 = arith.subf %381, %378 : vector<1x128xf32>
    %383 = vector.broadcast %cst_147 : f32 to vector<1x128xf32>
    %384 = arith.mulf %382, %383 : vector<1x128xf32>
    %385 = arith.addf %378, %384 : vector<1x128xf32>
    %cst_169 = arith.constant 1.000000e+00 : f32
    %386 = vector.broadcast %cst_169 : f32 to vector<1x128xf32>
    %387 = arith.cmpf oge, %385, %386 : vector<1x128xf32>
    %388 = arith.extui %387 : vector<1x128xi1> to vector<1x128xi32>
    %389 = arith.sitofp %388 : vector<1x128xi32> to vector<1x128xf32>
    %390 = arith.addf %356, %389 : vector<1x128xf32>
    %cst_170 = arith.constant 1.000000e+00 : f32
    %391 = vector.broadcast %cst_170 : f32 to vector<1x128xf32>
    %392 = arith.cmpf oge, %385, %391 : vector<1x128xf32>
    %cst_171 = arith.constant 0.000000e+00 : f32
    %393 = vector.broadcast %cst_171 : f32 to vector<1x128xf32>
    %394 = arith.select %392, %393, %385 : vector<1x128xi1>, vector<1x128xf32>
    %c2_i32_172 = arith.constant 2 : i32
    %c2_i32_173 = arith.constant 2 : i32
    %395 = arith.muli %c2_i32_172, %c2_i32_173 : i32
    %396 = tpu.assume_multiple %395, 2 : i32
    %c0_i32_174 = arith.constant 0 : i32
    %397 = arith.addi %396, %c0_i32_174 : i32
    %398 = arith.index_cast %397 : i32 to index
    %c0_175 = arith.constant 0 : index
    %399 = vector.load %arg9[%398, %c0_175] : memref<16x128xf32, #tpu.memory_space<vmem>>, vector<1x128xf32>
    %400 = arith.subf %399, %394 : vector<1x128xf32>
    %401 = vector.broadcast %cst_147 : f32 to vector<1x128xf32>
    %402 = arith.mulf %400, %401 : vector<1x128xf32>
    %403 = arith.addf %394, %402 : vector<1x128xf32>
    %cst_176 = arith.constant 1.000000e+00 : f32
    %404 = vector.broadcast %cst_176 : f32 to vector<1x128xf32>
    %405 = arith.cmpf oge, %403, %404 : vector<1x128xf32>
    %406 = arith.extui %405 : vector<1x128xi1> to vector<1x128xi32>
    %407 = arith.sitofp %406 : vector<1x128xi32> to vector<1x128xf32>
    %408 = arith.addf %374, %407 : vector<1x128xf32>
    %cst_177 = arith.constant 1.000000e+00 : f32
    %409 = vector.broadcast %cst_177 : f32 to vector<1x128xf32>
    %410 = arith.cmpf oge, %403, %409 : vector<1x128xf32>
    %cst_178 = arith.constant 0.000000e+00 : f32
    %411 = vector.broadcast %cst_178 : f32 to vector<1x128xf32>
    %412 = arith.select %410, %411, %403 : vector<1x128xi1>, vector<1x128xf32>
    %c1_i32_179 = arith.constant 1 : i32
    %413 = arith.addi %396, %c1_i32_179 : i32
    %414 = arith.index_cast %413 : i32 to index
    %c0_180 = arith.constant 0 : index
    %415 = vector.load %arg9[%414, %c0_180] : memref<16x128xf32, #tpu.memory_space<vmem>>, vector<1x128xf32>
    %416 = arith.subf %415, %412 : vector<1x128xf32>
    %417 = vector.broadcast %cst_147 : f32 to vector<1x128xf32>
    %418 = arith.mulf %416, %417 : vector<1x128xf32>
    %419 = arith.addf %412, %418 : vector<1x128xf32>
    %cst_181 = arith.constant 1.000000e+00 : f32
    %420 = vector.broadcast %cst_181 : f32 to vector<1x128xf32>
    %421 = arith.cmpf oge, %419, %420 : vector<1x128xf32>
    %422 = arith.extui %421 : vector<1x128xi1> to vector<1x128xi32>
    %423 = arith.sitofp %422 : vector<1x128xi32> to vector<1x128xf32>
    %424 = arith.addf %390, %423 : vector<1x128xf32>
    %cst_182 = arith.constant 1.000000e+00 : f32
    %425 = vector.broadcast %cst_182 : f32 to vector<1x128xf32>
    %426 = arith.cmpf oge, %419, %425 : vector<1x128xf32>
    %cst_183 = arith.constant 0.000000e+00 : f32
    %427 = vector.broadcast %cst_183 : f32 to vector<1x128xf32>
    %428 = arith.select %426, %427, %419 : vector<1x128xi1>, vector<1x128xf32>
    %c3_i32_184 = arith.constant 3 : i32
    %c2_i32_185 = arith.constant 2 : i32
    %429 = arith.muli %c3_i32_184, %c2_i32_185 : i32
    %430 = tpu.assume_multiple %429, 2 : i32
    %c0_i32_186 = arith.constant 0 : i32
    %431 = arith.addi %430, %c0_i32_186 : i32
    %432 = arith.index_cast %431 : i32 to index
    %c0_187 = arith.constant 0 : index
    %433 = vector.load %arg9[%432, %c0_187] : memref<16x128xf32, #tpu.memory_space<vmem>>, vector<1x128xf32>
    %434 = arith.subf %433, %428 : vector<1x128xf32>
    %435 = vector.broadcast %cst_147 : f32 to vector<1x128xf32>
    %436 = arith.mulf %434, %435 : vector<1x128xf32>
    %437 = arith.addf %428, %436 : vector<1x128xf32>
    %cst_188 = arith.constant 1.000000e+00 : f32
    %438 = vector.broadcast %cst_188 : f32 to vector<1x128xf32>
    %439 = arith.cmpf oge, %437, %438 : vector<1x128xf32>
    %440 = arith.extui %439 : vector<1x128xi1> to vector<1x128xi32>
    %441 = arith.sitofp %440 : vector<1x128xi32> to vector<1x128xf32>
    %442 = arith.addf %408, %441 : vector<1x128xf32>
    %cst_189 = arith.constant 1.000000e+00 : f32
    %443 = vector.broadcast %cst_189 : f32 to vector<1x128xf32>
    %444 = arith.cmpf oge, %437, %443 : vector<1x128xf32>
    %cst_190 = arith.constant 0.000000e+00 : f32
    %445 = vector.broadcast %cst_190 : f32 to vector<1x128xf32>
    %446 = arith.select %444, %445, %437 : vector<1x128xi1>, vector<1x128xf32>
    %c1_i32_191 = arith.constant 1 : i32
    %447 = arith.addi %430, %c1_i32_191 : i32
    %448 = arith.index_cast %447 : i32 to index
    %c0_192 = arith.constant 0 : index
    %449 = vector.load %arg9[%448, %c0_192] : memref<16x128xf32, #tpu.memory_space<vmem>>, vector<1x128xf32>
    %450 = arith.subf %449, %446 : vector<1x128xf32>
    %451 = vector.broadcast %cst_147 : f32 to vector<1x128xf32>
    %452 = arith.mulf %450, %451 : vector<1x128xf32>
    %453 = arith.addf %446, %452 : vector<1x128xf32>
    %cst_193 = arith.constant 1.000000e+00 : f32
    %454 = vector.broadcast %cst_193 : f32 to vector<1x128xf32>
    %455 = arith.cmpf oge, %453, %454 : vector<1x128xf32>
    %456 = arith.extui %455 : vector<1x128xi1> to vector<1x128xi32>
    %457 = arith.sitofp %456 : vector<1x128xi32> to vector<1x128xf32>
    %458 = arith.addf %424, %457 : vector<1x128xf32>
    %cst_194 = arith.constant 1.000000e+00 : f32
    %459 = vector.broadcast %cst_194 : f32 to vector<1x128xf32>
    %460 = arith.cmpf oge, %453, %459 : vector<1x128xf32>
    %cst_195 = arith.constant 0.000000e+00 : f32
    %461 = vector.broadcast %cst_195 : f32 to vector<1x128xf32>
    %462 = arith.select %460, %461, %453 : vector<1x128xi1>, vector<1x128xf32>
    %c4_i32_196 = arith.constant 4 : i32
    %c2_i32_197 = arith.constant 2 : i32
    %463 = arith.muli %c4_i32_196, %c2_i32_197 : i32
    %464 = tpu.assume_multiple %463, 2 : i32
    %c0_i32_198 = arith.constant 0 : i32
    %465 = arith.addi %464, %c0_i32_198 : i32
    %466 = arith.index_cast %465 : i32 to index
    %c0_199 = arith.constant 0 : index
    %467 = vector.load %arg9[%466, %c0_199] : memref<16x128xf32, #tpu.memory_space<vmem>>, vector<1x128xf32>
    %468 = arith.subf %467, %462 : vector<1x128xf32>
    %469 = vector.broadcast %cst_147 : f32 to vector<1x128xf32>
    %470 = arith.mulf %468, %469 : vector<1x128xf32>
    %471 = arith.addf %462, %470 : vector<1x128xf32>
    %cst_200 = arith.constant 1.000000e+00 : f32
    %472 = vector.broadcast %cst_200 : f32 to vector<1x128xf32>
    %473 = arith.cmpf oge, %471, %472 : vector<1x128xf32>
    %474 = arith.extui %473 : vector<1x128xi1> to vector<1x128xi32>
    %475 = arith.sitofp %474 : vector<1x128xi32> to vector<1x128xf32>
    %476 = arith.addf %442, %475 : vector<1x128xf32>
    %cst_201 = arith.constant 1.000000e+00 : f32
    %477 = vector.broadcast %cst_201 : f32 to vector<1x128xf32>
    %478 = arith.cmpf oge, %471, %477 : vector<1x128xf32>
    %cst_202 = arith.constant 0.000000e+00 : f32
    %479 = vector.broadcast %cst_202 : f32 to vector<1x128xf32>
    %480 = arith.select %478, %479, %471 : vector<1x128xi1>, vector<1x128xf32>
    %c1_i32_203 = arith.constant 1 : i32
    %481 = arith.addi %464, %c1_i32_203 : i32
    %482 = arith.index_cast %481 : i32 to index
    %c0_204 = arith.constant 0 : index
    %483 = vector.load %arg9[%482, %c0_204] : memref<16x128xf32, #tpu.memory_space<vmem>>, vector<1x128xf32>
    %484 = arith.subf %483, %480 : vector<1x128xf32>
    %485 = vector.broadcast %cst_147 : f32 to vector<1x128xf32>
    %486 = arith.mulf %484, %485 : vector<1x128xf32>
    %487 = arith.addf %480, %486 : vector<1x128xf32>
    %cst_205 = arith.constant 1.000000e+00 : f32
    %488 = vector.broadcast %cst_205 : f32 to vector<1x128xf32>
    %489 = arith.cmpf oge, %487, %488 : vector<1x128xf32>
    %490 = arith.extui %489 : vector<1x128xi1> to vector<1x128xi32>
    %491 = arith.sitofp %490 : vector<1x128xi32> to vector<1x128xf32>
    %492 = arith.addf %458, %491 : vector<1x128xf32>
    %cst_206 = arith.constant 1.000000e+00 : f32
    %493 = vector.broadcast %cst_206 : f32 to vector<1x128xf32>
    %494 = arith.cmpf oge, %487, %493 : vector<1x128xf32>
    %cst_207 = arith.constant 0.000000e+00 : f32
    %495 = vector.broadcast %cst_207 : f32 to vector<1x128xf32>
    %496 = arith.select %494, %495, %487 : vector<1x128xi1>, vector<1x128xf32>
    %c5_i32_208 = arith.constant 5 : i32
    %c2_i32_209 = arith.constant 2 : i32
    %497 = arith.muli %c5_i32_208, %c2_i32_209 : i32
    %498 = tpu.assume_multiple %497, 2 : i32
    %c0_i32_210 = arith.constant 0 : i32
    %499 = arith.addi %498, %c0_i32_210 : i32
    %500 = arith.index_cast %499 : i32 to index
    %c0_211 = arith.constant 0 : index
    %501 = vector.load %arg9[%500, %c0_211] : memref<16x128xf32, #tpu.memory_space<vmem>>, vector<1x128xf32>
    %502 = arith.subf %501, %496 : vector<1x128xf32>
    %503 = vector.broadcast %cst_147 : f32 to vector<1x128xf32>
    %504 = arith.mulf %502, %503 : vector<1x128xf32>
    %505 = arith.addf %496, %504 : vector<1x128xf32>
    %cst_212 = arith.constant 1.000000e+00 : f32
    %506 = vector.broadcast %cst_212 : f32 to vector<1x128xf32>
    %507 = arith.cmpf oge, %505, %506 : vector<1x128xf32>
    %508 = arith.extui %507 : vector<1x128xi1> to vector<1x128xi32>
    %509 = arith.sitofp %508 : vector<1x128xi32> to vector<1x128xf32>
    %510 = arith.addf %476, %509 : vector<1x128xf32>
    %cst_213 = arith.constant 1.000000e+00 : f32
    %511 = vector.broadcast %cst_213 : f32 to vector<1x128xf32>
    %512 = arith.cmpf oge, %505, %511 : vector<1x128xf32>
    %cst_214 = arith.constant 0.000000e+00 : f32
    %513 = vector.broadcast %cst_214 : f32 to vector<1x128xf32>
    %514 = arith.select %512, %513, %505 : vector<1x128xi1>, vector<1x128xf32>
    %c1_i32_215 = arith.constant 1 : i32
    %515 = arith.addi %498, %c1_i32_215 : i32
    %516 = arith.index_cast %515 : i32 to index
    %c0_216 = arith.constant 0 : index
    %517 = vector.load %arg9[%516, %c0_216] : memref<16x128xf32, #tpu.memory_space<vmem>>, vector<1x128xf32>
    %518 = arith.subf %517, %514 : vector<1x128xf32>
    %519 = vector.broadcast %cst_147 : f32 to vector<1x128xf32>
    %520 = arith.mulf %518, %519 : vector<1x128xf32>
    %521 = arith.addf %514, %520 : vector<1x128xf32>
    %cst_217 = arith.constant 1.000000e+00 : f32
    %522 = vector.broadcast %cst_217 : f32 to vector<1x128xf32>
    %523 = arith.cmpf oge, %521, %522 : vector<1x128xf32>
    %524 = arith.extui %523 : vector<1x128xi1> to vector<1x128xi32>
    %525 = arith.sitofp %524 : vector<1x128xi32> to vector<1x128xf32>
    %526 = arith.addf %492, %525 : vector<1x128xf32>
    %cst_218 = arith.constant 1.000000e+00 : f32
    %527 = vector.broadcast %cst_218 : f32 to vector<1x128xf32>
    %528 = arith.cmpf oge, %521, %527 : vector<1x128xf32>
    %cst_219 = arith.constant 0.000000e+00 : f32
    %529 = vector.broadcast %cst_219 : f32 to vector<1x128xf32>
    %530 = arith.select %528, %529, %521 : vector<1x128xi1>, vector<1x128xf32>
    %c6_i32_220 = arith.constant 6 : i32
    %c2_i32_221 = arith.constant 2 : i32
    %531 = arith.muli %c6_i32_220, %c2_i32_221 : i32
    %532 = tpu.assume_multiple %531, 2 : i32
    %c0_i32_222 = arith.constant 0 : i32
    %533 = arith.addi %532, %c0_i32_222 : i32
    %534 = arith.index_cast %533 : i32 to index
    %c0_223 = arith.constant 0 : index
    %535 = vector.load %arg9[%534, %c0_223] : memref<16x128xf32, #tpu.memory_space<vmem>>, vector<1x128xf32>
    %536 = arith.subf %535, %530 : vector<1x128xf32>
    %537 = vector.broadcast %cst_147 : f32 to vector<1x128xf32>
    %538 = arith.mulf %536, %537 : vector<1x128xf32>
    %539 = arith.addf %530, %538 : vector<1x128xf32>
    %cst_224 = arith.constant 1.000000e+00 : f32
    %540 = vector.broadcast %cst_224 : f32 to vector<1x128xf32>
    %541 = arith.cmpf oge, %539, %540 : vector<1x128xf32>
    %542 = arith.extui %541 : vector<1x128xi1> to vector<1x128xi32>
    %543 = arith.sitofp %542 : vector<1x128xi32> to vector<1x128xf32>
    %544 = arith.addf %510, %543 : vector<1x128xf32>
    %cst_225 = arith.constant 1.000000e+00 : f32
    %545 = vector.broadcast %cst_225 : f32 to vector<1x128xf32>
    %546 = arith.cmpf oge, %539, %545 : vector<1x128xf32>
    %cst_226 = arith.constant 0.000000e+00 : f32
    %547 = vector.broadcast %cst_226 : f32 to vector<1x128xf32>
    %548 = arith.select %546, %547, %539 : vector<1x128xi1>, vector<1x128xf32>
    %c1_i32_227 = arith.constant 1 : i32
    %549 = arith.addi %532, %c1_i32_227 : i32
    %550 = arith.index_cast %549 : i32 to index
    %c0_228 = arith.constant 0 : index
    %551 = vector.load %arg9[%550, %c0_228] : memref<16x128xf32, #tpu.memory_space<vmem>>, vector<1x128xf32>
    %552 = arith.subf %551, %548 : vector<1x128xf32>
    %553 = vector.broadcast %cst_147 : f32 to vector<1x128xf32>
    %554 = arith.mulf %552, %553 : vector<1x128xf32>
    %555 = arith.addf %548, %554 : vector<1x128xf32>
    %cst_229 = arith.constant 1.000000e+00 : f32
    %556 = vector.broadcast %cst_229 : f32 to vector<1x128xf32>
    %557 = arith.cmpf oge, %555, %556 : vector<1x128xf32>
    %558 = arith.extui %557 : vector<1x128xi1> to vector<1x128xi32>
    %559 = arith.sitofp %558 : vector<1x128xi32> to vector<1x128xf32>
    %560 = arith.addf %526, %559 : vector<1x128xf32>
    %cst_230 = arith.constant 1.000000e+00 : f32
    %561 = vector.broadcast %cst_230 : f32 to vector<1x128xf32>
    %562 = arith.cmpf oge, %555, %561 : vector<1x128xf32>
    %cst_231 = arith.constant 0.000000e+00 : f32
    %563 = vector.broadcast %cst_231 : f32 to vector<1x128xf32>
    %564 = arith.select %562, %563, %555 : vector<1x128xi1>, vector<1x128xf32>
    %c7_i32_232 = arith.constant 7 : i32
    %c2_i32_233 = arith.constant 2 : i32
    %565 = arith.muli %c7_i32_232, %c2_i32_233 : i32
    %566 = tpu.assume_multiple %565, 2 : i32
    %c0_i32_234 = arith.constant 0 : i32
    %567 = arith.addi %566, %c0_i32_234 : i32
    %568 = arith.index_cast %567 : i32 to index
    %c0_235 = arith.constant 0 : index
    %569 = vector.load %arg9[%568, %c0_235] : memref<16x128xf32, #tpu.memory_space<vmem>>, vector<1x128xf32>
    %570 = arith.subf %569, %564 : vector<1x128xf32>
    %571 = vector.broadcast %cst_147 : f32 to vector<1x128xf32>
    %572 = arith.mulf %570, %571 : vector<1x128xf32>
    %573 = arith.addf %564, %572 : vector<1x128xf32>
    %cst_236 = arith.constant 1.000000e+00 : f32
    %574 = vector.broadcast %cst_236 : f32 to vector<1x128xf32>
    %575 = arith.cmpf oge, %573, %574 : vector<1x128xf32>
    %576 = arith.extui %575 : vector<1x128xi1> to vector<1x128xi32>
    %577 = arith.sitofp %576 : vector<1x128xi32> to vector<1x128xf32>
    %578 = arith.addf %544, %577 : vector<1x128xf32>
    %cst_237 = arith.constant 1.000000e+00 : f32
    %579 = vector.broadcast %cst_237 : f32 to vector<1x128xf32>
    %580 = arith.cmpf oge, %573, %579 : vector<1x128xf32>
    %cst_238 = arith.constant 0.000000e+00 : f32
    %581 = vector.broadcast %cst_238 : f32 to vector<1x128xf32>
    %582 = arith.select %580, %581, %573 : vector<1x128xi1>, vector<1x128xf32>
    %c1_i32_239 = arith.constant 1 : i32
    %583 = arith.addi %566, %c1_i32_239 : i32
    %584 = arith.index_cast %583 : i32 to index
    %c0_240 = arith.constant 0 : index
    %585 = vector.load %arg9[%584, %c0_240] : memref<16x128xf32, #tpu.memory_space<vmem>>, vector<1x128xf32>
    %586 = arith.subf %585, %582 : vector<1x128xf32>
    %587 = vector.broadcast %cst_147 : f32 to vector<1x128xf32>
    %588 = arith.mulf %586, %587 : vector<1x128xf32>
    %589 = arith.addf %582, %588 : vector<1x128xf32>
    %cst_241 = arith.constant 1.000000e+00 : f32
    %590 = vector.broadcast %cst_241 : f32 to vector<1x128xf32>
    %591 = arith.cmpf oge, %589, %590 : vector<1x128xf32>
    %592 = arith.extui %591 : vector<1x128xi1> to vector<1x128xi32>
    %593 = arith.sitofp %592 : vector<1x128xi32> to vector<1x128xf32>
    %594 = arith.addf %560, %593 : vector<1x128xf32>
    %cst_242 = arith.constant 1.000000e+00 : f32
    %595 = vector.broadcast %cst_242 : f32 to vector<1x128xf32>
    %596 = arith.cmpf oge, %589, %595 : vector<1x128xf32>
    %cst_243 = arith.constant 0.000000e+00 : f32
    %597 = vector.broadcast %cst_243 : f32 to vector<1x128xf32>
    %598 = arith.select %596, %597, %589 : vector<1x128xi1>, vector<1x128xf32>
    %c8_i32_244 = arith.constant 8 : i32
    %c0_245 = arith.constant 0 : index
    %c0_246 = arith.constant 0 : index
    %599 = vector.load %arg11[%c0_245, %c0_246] : memref<1x128xf32, #tpu.memory_space<vmem>>, vector<1x128xf32>
    tpu.vector_store %arg11[%c0_245, %c0_246], %598 {strides = array<i32>} : memref<1x128xf32, #tpu.memory_space<vmem>>, vector<1x128xf32>,
    %c0_247 = arith.constant 0 : index
    %c0_248 = arith.constant 0 : index
    %600 = vector.load %arg6[%c0_247, %c0_248] : memref<2x128xf32, #tpu.memory_space<vmem>>, vector<2x128xf32>
    %601 = tpu.concatenate %578, %594 in 0 : vector<1x128xf32>, vector<1x128xf32> -> vector<2x128xf32>
    %602 = arith.addf %600, %601 : vector<2x128xf32>
    %c0_249 = arith.constant 0 : index
    %c0_250 = arith.constant 0 : index
    %603 = vector.load %arg6[%c0_249, %c0_250] : memref<2x128xf32, #tpu.memory_space<vmem>>, vector<2x128xf32>
    tpu.vector_store %arg6[%c0_249, %c0_250], %602 {strides = array<i32>} : memref<2x128xf32, #tpu.memory_space<vmem>>, vector<2x128xf32>,
    %c0_i32_251 = arith.constant 0 : i32
    %604 = arith.cmpi eq, %arg0, %c0_i32_251 : i32
    %605 = arith.extui %604 : i1 to i32
    %c0_i32_252 = arith.constant 0 : i32
    %606 = arith.cmpi ne, %605, %c0_i32_252 : i32
    scf.if %606 {
      %c0_253 = arith.constant 0 : index
      %c0_254 = arith.constant 0 : index
      %607 = vector.load %arg6[%c0_253, %c0_254] : memref<2x128xf32, #tpu.memory_space<vmem>>, vector<2x128xf32>
      %cst_255 = arith.constant 1.250000e-01 : f32
      %608 = vector.broadcast %cst_255 : f32 to vector<2x128xf32>
      %609 = arith.mulf %607, %608 : vector<2x128xf32>
      %c0_256 = arith.constant 0 : index
      %c0_257 = arith.constant 0 : index
      %610 = vector.load %arg6[%c0_256, %c0_257] : memref<2x128xf32, #tpu.memory_space<vmem>>, vector<2x128xf32>
      tpu.vector_store %arg6[%c0_256, %c0_257], %609 {strides = array<i32>} : memref<2x128xf32, #tpu.memory_space<vmem>>, vector<2x128xf32>,
    } else {
    }
    return
  }
  func.func @transform_0(%arg0: i32) -> (i32, i32) {
    %c0_i32 = arith.constant 0 : i32
    %c0_i32_0 = arith.constant 0 : i32
    return %arg0, %c0_i32 : i32, i32
  }
  func.func @transform_1(%arg0: i32) -> (i32, i32) {
    %c0_i32 = arith.constant 0 : i32
    %c0_i32_0 = arith.constant 0 : i32
    %c0_i32_1 = arith.constant 0 : i32
    return %c0_i32, %c0_i32_0 : i32, i32
  }
  func.func @transform_2(%arg0: i32) -> (i32, i32) {
    %c0_i32 = arith.constant 0 : i32
    %c0_i32_0 = arith.constant 0 : i32
    %c0_i32_1 = arith.constant 0 : i32
    return %c0_i32, %c0_i32_0 : i32, i32
  }
  func.func @transform_3(%arg0: i32) -> (i32, i32) {
    %c0_i32 = arith.constant 0 : i32
    %c0_i32_0 = arith.constant 0 : i32
    %c0_i32_1 = arith.constant 0 : i32
    return %c0_i32, %c0_i32_0 : i32, i32
  }
  func.func @transform_4(%arg0: i32) -> (i32, i32) {
    %c0_i32 = arith.constant 0 : i32
    %c0_i32_0 = arith.constant 0 : i32
    %c0_i32_1 = arith.constant 0 : i32
    return %c0_i32, %c0_i32_0 : i32, i32
  }
  func.func @transform_5(%arg0: i32) -> (i32, i32) {
    %c0_i32 = arith.constant 0 : i32
    %c0_i32_0 = arith.constant 0 : i32
    %c0_i32_1 = arith.constant 0 : i32
    return %c0_i32, %c0_i32_0 : i32, i32
  }
}

</mosaic_0001>

<llo_original>
// kernel: tpu_custom_call.1
$region0: #{tpu_custom_call.1}
  #allocation0 [shape = 'u32[]', space=smem, size = 0x4, offset = 0x4, fixed_abs, tag = 'smem constant byte address 0x4 - core index']
  #allocation1 [shape = 'u32[144,128]{1,0:T(1,128)}', space=vmem, size = 0x12000, scoped, tag = 'internal scratch']
  #allocation2 [shape = 'f32[16,128]{1,0:T(8,128)}', space=vmem, size = 0x2000, scoped, tag = 'scratch operand']
  #allocation3 [shape = 'f32[16,128]{1,0:T(8,128)}', space=vmem, size = 0x2000, scoped, tag = 'scratch operand']
  #allocation4 [shape = 'f32[16,128]{1,0:T(8,128)}', space=vmem, size = 0x2000, scoped, tag = 'scratch operand']
  #allocation5 [shape = 'f32[1,128]{1,0:T(1,128)}', space=vmem, size = 0x200, scoped, tag = 'scratch operand']
  #allocation6 [shape = 'f32[1,128]{1,0:T(1,128)}', space=vmem, size = 0x200, scoped, tag = 'scratch operand']
  %s0 = inlined_call_operand.hbm [shape: bf16[16,128], index: 0, kind: input, shape index: {}]
  %s1 = inlined_call_operand.hbm [shape: bf16[128,128], index: 1, kind: input, shape index: {}]
  %s2 = inlined_call_operand.vmem [shape: f32[1,128], index: 2, kind: input, shape index: {}]
  %s3 = inlined_call_operand.hbm [shape: bf16[128,128], index: 3, kind: input, shape index: {}]
  %s4 = inlined_call_operand.vmem [shape: f32[1,128], index: 4, kind: input, shape index: {}]
  %s5 = inlined_call_operand.hbm [shape: f32[2,128], index: 5, kind: output, shape index: {}]
  %s6 = sld [smem:[#allocation0]]
  $region50: #{tpu_custom_call.1} parent=0
    _
  %s8 = ssub.s32 1, %s6
  %s9 = scalar_select 0, %s8, %s6
  $region1: #{tpu_custom_call.1} parent=0
    #allocation7 [shape = 'u8[4096]{0}', space=vmem, size = 0x1000, scoped, tag = 'input window, operand 0, single buffered']
    #allocation8 [shape = 's32[1]{0}', space=sflag, size = 0x4, scoped, tag = 'scoped memory for tpu_custom_call.1']
    #allocation9 [shape = 's32[1]{0}', space=sflag, size = 0x4, scoped, tag = 'scoped memory for tpu_custom_call.1']
    #allocation10 [shape = 'u8[32768]{0}', space=vmem, size = 0x8000, scoped, tag = 'input window, operand 1, single buffered']
    #allocation11 [shape = 's32[1]{0}', space=sflag, size = 0x4, scoped, tag = 'scoped memory for tpu_custom_call.1']
    #allocation12 [shape = 'u8[32768]{0}', space=vmem, size = 0x8000, scoped, tag = 'input window, operand 3, single buffered']
    #allocation13 [shape = 'u8[1024]{0}', space=vmem, size = 0x400, scoped, tag = 'output window, operand 0, single buffered']
    %10 = vsyncpa [#allocation8], 0
    %11 = vsyncpa [#allocation11], 0
    %12 = vsyncpa [#allocation9], 0
    // Predicated region
    $region2: #{tpu_custom_call.1} parent=1 // pred_check
      _
    $region3: #{tpu_custom_call.1} parent=1 // pred_check_branch
      %14 = sbr.rel (0) target = $region5
    $region4: #{tpu_custom_call.1} parent=1 // pred_region
      %s16 = ssub.s32 128, 128
      %17 = vsyncadd [#allocation8], %s16
      %s18 = sshll.u32 [#allocation7], 4
      %s19 = int_to_ptr.vmem [resolvable:$true] %s18
      %24 = dma.hbm_to_vmem [thread:$0]  %s0, 128, %s19, [#allocation8], 64, 64, 4
    $region5: #{tpu_custom_call.1} parent=1 // pred_fallthru
      _
    // Predicated region
    $region6: #{tpu_custom_call.1} parent=1 // pred_check
      _
    $region7: #{tpu_custom_call.1} parent=1 // pred_check_branch
      %26 = sbr.rel (0) target = $region9
    $region8: #{tpu_custom_call.1} parent=1 // pred_region
      %s28 = ssub.s32 1024, 1024
      %29 = vsyncadd [#allocation11], %s28
      %s30 = sshll.u32 [#allocation10], 4
      %s31 = int_to_ptr.vmem [resolvable:$true] %s30
      %36 = dma.hbm_to_vmem [thread:$0]  %s1, 1024, %s31, [#allocation11], 64, 64, 4
    $region9: #{tpu_custom_call.1} parent=1 // pred_fallthru
      _
    // Predicated region
    $region10: #{tpu_custom_call.1} parent=1 // pred_check
      _
    $region11: #{tpu_custom_call.1} parent=1 // pred_check_branch
      %38 = sbr.rel (0) target = $region13
    $region12: #{tpu_custom_call.1} parent=1 // pred_region
      _
    $region13: #{tpu_custom_call.1} parent=1 // pred_fallthru
      _
    // Predicated region
    $region14: #{tpu_custom_call.1} parent=1 // pred_check
      _
    $region15: #{tpu_custom_call.1} parent=1 // pred_check_branch
      %40 = sbr.rel (0) target = $region17
    $region16: #{tpu_custom_call.1} parent=1 // pred_region
      %s42 = ssub.s32 1024, 1024
      %43 = vsyncadd [#allocation11], %s42
      %s44 = sshll.u32 [#allocation12], 4
      %s45 = int_to_ptr.vmem [resolvable:$true] %s44
      %50 = dma.hbm_to_vmem [thread:$0]  %s3, 1024, %s45, [#allocation11], 64, 64, 4
    $region17: #{tpu_custom_call.1} parent=1 // pred_fallthru
      _
    // Predicated region
    $region18: #{tpu_custom_call.1} parent=1 // pred_check
      _
    $region19: #{tpu_custom_call.1} parent=1 // pred_check_branch
      %52 = sbr.rel (0) target = $region21
    $region20: #{tpu_custom_call.1} parent=1 // pred_region
      _
    $region21: #{tpu_custom_call.1} parent=1 // pred_fallthru
      _
    // Predicated region
    $region22: #{tpu_custom_call.1} parent=1 // pred_check
      _
    $region23: #{tpu_custom_call.1} parent=1 // pred_check_branch
      %54 = sbr.rel (0) target = $region25
    $region24: #{tpu_custom_call.1} parent=1 // pred_region
      %55 = dma.done [#allocation8], 128
    $region25: #{tpu_custom_call.1} parent=1 // pred_fallthru
      _
    // Predicated region
    $region26: #{tpu_custom_call.1} parent=1 // pred_check
      _
    $region27: #{tpu_custom_call.1} parent=1 // pred_check_branch
      %57 = sbr.rel (0) target = $region29
    $region28: #{tpu_custom_call.1} parent=1 // pred_region
      %58 = dma.done [#allocation11], 1024
    $region29: #{tpu_custom_call.1} parent=1 // pred_fallthru
      _
    // Predicated region
    $region30: #{tpu_custom_call.1} parent=1 // pred_check
      _
    $region31: #{tpu_custom_call.1} parent=1 // pred_check_branch
      %60 = sbr.rel (0) target = $region33
    $region32: #{tpu_custom_call.1} parent=1 // pred_region
      %61 = dma.done [#allocation11], 1024
    $region33: #{tpu_custom_call.1} parent=1 // pred_fallthru
      _
    %p63 = scmp.eq.s32.totalorder 0, 0
    // Predicated region
    $region34: #{tpu_custom_call.1} parent=1 // pred_check
      %p64 = pneg %p63
    $region35: #{tpu_custom_call.1} parent=1 // pred_check_branch
      %66 = sbr.rel (%p64) target = $region37
    $region36: #{tpu_custom_call.1} parent=1 // pred_region
      %67 = vst [vmem:[#allocation5] sm:$0x1] 0.0
      %68 = vst [vmem:[#allocation6] sm:$0x1] 0.0
      %69 = vst [vmem:[#allocation13] sm:$0x3] 0.0
    $region37: #{tpu_custom_call.1} parent=1 // pred_fallthru
      _
    %v70 = vld [vmem:[#allocation7] sm:$0xf]
    %v71 = vld [vmem:[#allocation7 + $0x4] sm:$0xf]
    %v72 = vld [vmem:[#allocation10] sm:$0xf]
    %v73 = vld [vmem:[#allocation10 + $0x4] sm:$0xf]
    %v74 = vld [vmem:[#allocation10 + $0x8] sm:$0xf]
    %v75 = vld [vmem:[#allocation10 + $0xc] sm:$0xf]
    %v76 = vld [vmem:[#allocation10 + $0x10] sm:$0xf]
    %v77 = vld [vmem:[#allocation10 + $0x14] sm:$0xf]
    %v78 = vld [vmem:[#allocation10 + $0x18] sm:$0xf]
    %v79 = vld [vmem:[#allocation10 + $0x1c] sm:$0xf]
    %v80 = vld [vmem:[#allocation10 + $0x20] sm:$0xf]
    %v81 = vld [vmem:[#allocation10 + $0x24] sm:$0xf]
    %v82 = vld [vmem:[#allocation10 + $0x28] sm:$0xf]
    %v83 = vld [vmem:[#allocation10 + $0x2c] sm:$0xf]
    %v84 = vld [vmem:[#allocation10 + $0x30] sm:$0xf]
    %v85 = vld [vmem:[#allocation10 + $0x34] sm:$0xf]
    %v86 = vld [vmem:[#allocation10 + $0x38] sm:$0xf]
    %v87 = vld [vmem:[#allocation10 + $0x3c] sm:$0xf]
    %v88 = vld [vmem:[%s2] sm:$0x1]
    %v90 = vlaneseq
    %v91 = vshrl.u32 %v90, 7
    %v92 = vsub.s32 0, %v91
    %v93 = vrot.slane %v88, %v92
    %v97 = vunpack.c.l.b16 %v70
    %v98 = vunpack.c.l.b16 %v71
    %v99 = vpack.c.b16 %v98, %v97
    %v117 = vunpack.c.l.b16 %v72
    %v118 = vunpack.c.l.b16 %v73
    %v119 = vunpack.c.l.b16 %v74
    %v120 = vunpack.c.l.b16 %v75
    %v121 = vunpack.c.l.b16 %v76
    %v122 = vunpack.c.l.b16 %v77
    %v123 = vunpack.c.l.b16 %v78
    %v124 = vunpack.c.l.b16 %v79
    %v125 = vunpack.c.l.b16 %v80
    %v126 = vunpack.c.l.b16 %v81
    %v127 = vunpack.c.l.b16 %v82
    %v128 = vunpack.c.l.b16 %v83
    %v129 = vunpack.c.l.b16 %v84
    %v130 = vunpack.c.l.b16 %v85
    %v131 = vunpack.c.l.b16 %v86
    %v132 = vunpack.c.l.b16 %v87
    %v133 = vpack.c.b16 %v118, %v117
    %v134 = vpack.c.b16 %v120, %v119
    %v135 = vpack.c.b16 %v122, %v121
    %v136 = vpack.c.b16 %v124, %v123
    %v137 = vpack.c.b16 %v126, %v125
    %v138 = vpack.c.b16 %v128, %v127
    %v139 = vpack.c.b16 %v130, %v129
    %v140 = vpack.c.b16 %v132, %v131
    %149 = vmatprep.subr.bf16.mxu0 0
    %150 = vmatpush1.bf16.msra.mxu0 %v133
    %151 = vmatprep.subr.bf16.mxu0 0
    %152 = vmatpush1.bf16.msra.mxu0 %v134
    %153 = vmatprep.subr.bf16.mxu0 0
    %154 = vmatpush1.bf16.msra.mxu0 %v135
    %155 = vmatprep.subr.bf16.mxu0 0
    %156 = vmatpush1.bf16.msra.mxu0 %v136
    %157 = vmatprep.subr.bf16.mxu0 0
    %158 = vmatpush1.bf16.msra.mxu0 %v137
    %159 = vmatprep.subr.bf16.mxu0 0
    %160 = vmatpush1.bf16.msra.mxu0 %v138
    %161 = vmatprep.subr.bf16.mxu0 0
    %162 = vmatpush1.bf16.msra.mxu0 %v139
    %163 = vmatprep.subr.bf16.mxu0 0
    %164 = vmatpush1.bf16.msra.mxu0 %v140
    %165 = vmatprep.subr.bf16.mxu0 0
    %166 = vmatpush1.bf16.msra.mxu0 0
    %167 = vmatprep.subr.bf16.mxu0 0
    %168 = vmatpush1.bf16.msra.mxu0 0
    %169 = vmatprep.subr.bf16.mxu0 0
    %170 = vmatpush1.bf16.msra.mxu0 0
    %171 = vmatprep.subr.bf16.mxu0 0
    %172 = vmatpush1.bf16.msra.mxu0 0
    %173 = vmatprep.subr.bf16.mxu0 0
    %174 = vmatpush1.bf16.msra.mxu0 0
    %175 = vmatprep.subr.bf16.mxu0 0
    %176 = vmatpush1.bf16.msra.mxu0 0
    %177 = vmatprep.subr.bf16.mxu0 0
    %178 = vmatpush1.bf16.msra.mxu0 0
    %179 = vmatprep.subr.bf16.mxu0 0
    %180 = vmatpush1.bf16.msra.mxu0 0
    %181 = vmatprep.mubr.bf16.mxu0 0
    %182 = vmatmul.mubr.bf16.gmra.mrb[0].mxu0 %v99
    %v183 = vpop.f32.mrb[0].mxu0
    %v184 = vadd.f32 %v93, %v183
    %v185 = vpop.f32.mrb[0].mxu0
    %v186 = vpop.f32.mrb[0].mxu0
    %v187 = vadd.f32 %v93, %v186
    %v188 = vpop.f32.mrb[0].mxu0
    %189 = vdwg.mxu0
    %190 = vst [vmem:[#allocation2] sm:$0xff] %v184
    %191 = vst [vmem:[#allocation2 + $0x8] sm:$0xff] %v187
    %v192 = vld [vmem:[#allocation5] sm:$0x1]
    %v193 = vld [vmem:[#allocation2] sm:$0x1]
    %v194 = vsub.f32 %v193, %v192
    %v195 = vmul.f32 %v194, 0.5
    %v196 = vadd.f32 %v192, %v195
    %vm197 = vcmp.ge.f32.partialorder %v196, 1.0
    %v198 = vsel %vm197, 1, 0
    %v199 = vcvt.s32.f32 %v198
    %200 = vst [vmem:[#allocation3] sm:$0x1] %v199
    %v201 = vsel %vm197, 0.0, %v196
    %s202 = sadd.s32 0, 1
    %s203 = scalar_lea.vmem [#allocation2], %s202
    %v204 = vld [vmem:[%s203] sm:$0x1]
    %v205 = vsub.f32 %v204, %v201
    %v206 = vmul.f32 %v205, 0.5
    %v207 = vadd.f32 %v201, %v206
    %vm208 = vcmp.ge.f32.partialorder %v207, 1.0
    %v209 = vsel %vm208, 1, 0
    %v210 = vcvt.s32.f32 %v209
    %s211 = scalar_lea.vmem [#allocation3], %s202
    %212 = vst [vmem:[%s211] sm:$0x1] %v210
    %v213 = vsel %vm208, 0.0, %v207
    %s214 = scalar_lea.vmem [#allocation2], 2
    %v215 = vld [vmem:[%s214] sm:$0x1]
    %v216 = vsub.f32 %v215, %v213
    %v217 = vmul.f32 %v216, 0.5
    %v218 = vadd.f32 %v213, %v217
    %vm219 = vcmp.ge.f32.partialorder %v218, 1.0
    %v220 = vsel %vm219, 1, 0
    %v221 = vcvt.s32.f32 %v220
    %s222 = scalar_lea.vmem [#allocation3], 2
    %223 = vst [vmem:[%s222] sm:$0x1] %v221
    %v224 = vsel %vm219, 0.0, %v218
    %s225 = sadd.s32 2, 1
    %s226 = scalar_lea.vmem [#allocation2], %s225
    %v227 = vld [vmem:[%s226] sm:$0x1]
    %v228 = vsub.f32 %v227, %v224
    %v229 = vmul.f32 %v228, 0.5
    %v230 = vadd.f32 %v224, %v229
    %vm231 = vcmp.ge.f32.partialorder %v230, 1.0
    %v232 = vsel %vm231, 1, 0
    %v233 = vcvt.s32.f32 %v232
    %s234 = scalar_lea.vmem [#allocation3], %s225
    %235 = vst [vmem:[%s234] sm:$0x1] %v233
    %v236 = vsel %vm231, 0.0, %v230
    %s237 = scalar_lea.vmem [#allocation2], 4
    %v238 = vld [vmem:[%s237] sm:$0x1]
    %v239 = vsub.f32 %v238, %v236
    %v240 = vmul.f32 %v239, 0.5
    %v241 = vadd.f32 %v236, %v240
    %vm242 = vcmp.ge.f32.partialorder %v241, 1.0
    %v243 = vsel %vm242, 1, 0
    %v244 = vcvt.s32.f32 %v243
    %s245 = scalar_lea.vmem [#allocation3], 4
    %246 = vst [vmem:[%s245] sm:$0x1] %v244
    %v247 = vsel %vm242, 0.0, %v241
    %s248 = sadd.s32 4, 1
    %s249 = scalar_lea.vmem [#allocation2], %s248
    %v250 = vld [vmem:[%s249] sm:$0x1]
    %v251 = vsub.f32 %v250, %v247
    %v252 = vmul.f32 %v251, 0.5
    %v253 = vadd.f32 %v247, %v252
    %vm254 = vcmp.ge.f32.partialorder %v253, 1.0
    %v255 = vsel %vm254, 1, 0
    %v256 = vcvt.s32.f32 %v255
    %s257 = scalar_lea.vmem [#allocation3], %s248
    %258 = vst [vmem:[%s257] sm:$0x1] %v256
    %v259 = vsel %vm254, 0.0, %v253
    %s260 = scalar_lea.vmem [#allocation2], 6
    %v261 = vld [vmem:[%s260] sm:$0x1]
    %v262 = vsub.f32 %v261, %v259
    %v263 = vmul.f32 %v262, 0.5
    %v264 = vadd.f32 %v259, %v263
    %vm265 = vcmp.ge.f32.partialorder %v264, 1.0
    %v266 = vsel %vm265, 1, 0
    %v267 = vcvt.s32.f32 %v266
    %s268 = scalar_lea.vmem [#allocation3], 6
    %269 = vst [vmem:[%s268] sm:$0x1] %v267
    %v270 = vsel %vm265, 0.0, %v264
    %s271 = sadd.s32 6, 1
    %s272 = scalar_lea.vmem [#allocation2], %s271
    %v273 = vld [vmem:[%s272] sm:$0x1]
    %v274 = vsub.f32 %v273, %v270
    %v275 = vmul.f32 %v274, 0.5
    %v276 = vadd.f32 %v270, %v275
    %vm277 = vcmp.ge.f32.partialorder %v276, 1.0
    %v278 = vsel %vm277, 1, 0
    %v279 = vcvt.s32.f32 %v278
    %s280 = scalar_lea.vmem [#allocation3], %s271
    %281 = vst [vmem:[%s280] sm:$0x1] %v279
    %v282 = vsel %vm277, 0.0, %v276
    %s283 = scalar_lea.vmem [#allocation2], 8
    %v284 = vld [vmem:[%s283] sm:$0x1]
    %v285 = vsub.f32 %v284, %v282
    %v286 = vmul.f32 %v285, 0.5
    %v287 = vadd.f32 %v282, %v286
    %vm288 = vcmp.ge.f32.partialorder %v287, 1.0
    %v289 = vsel %vm288, 1, 0
    %v290 = vcvt.s32.f32 %v289
    %s291 = scalar_lea.vmem [#allocation3], 8
    %292 = vst [vmem:[%s291] sm:$0x1] %v290
    %v293 = vsel %vm288, 0.0, %v287
    %s294 = sadd.s32 8, 1
    %s295 = scalar_lea.vmem [#allocation2], %s294
    %v296 = vld [vmem:[%s295] sm:$0x1]
    %v297 = vsub.f32 %v296, %v293
    %v298 = vmul.f32 %v297, 0.5
    %v299 = vadd.f32 %v293, %v298
    %vm300 = vcmp.ge.f32.partialorder %v299, 1.0
    %v301 = vsel %vm300, 1, 0
    %v302 = vcvt.s32.f32 %v301
    %s303 = scalar_lea.vmem [#allocation3], %s294
    %304 = vst [vmem:[%s303] sm:$0x1] %v302
    %v305 = vsel %vm300, 0.0, %v299
    %s306 = scalar_lea.vmem [#allocation2], 10
    %v307 = vld [vmem:[%s306] sm:$0x1]
    %v308 = vsub.f32 %v307, %v305
    %v309 = vmul.f32 %v308, 0.5
    %v310 = vadd.f32 %v305, %v309
    %vm311 = vcmp.ge.f32.partialorder %v310, 1.0
    %v312 = vsel %vm311, 1, 0
    %v313 = vcvt.s32.f32 %v312
    %s314 = scalar_lea.vmem [#allocation3], 10
    %315 = vst [vmem:[%s314] sm:$0x1] %v313
    %v316 = vsel %vm311, 0.0, %v310
    %s317 = sadd.s32 10, 1
    %s318 = scalar_lea.vmem [#allocation2], %s317
    %v319 = vld [vmem:[%s318] sm:$0x1]
    %v320 = vsub.f32 %v319, %v316
    %v321 = vmul.f32 %v320, 0.5
    %v322 = vadd.f32 %v316, %v321
    %vm323 = vcmp.ge.f32.partialorder %v322, 1.0
    %v324 = vsel %vm323, 1, 0
    %v325 = vcvt.s32.f32 %v324
    %s326 = scalar_lea.vmem [#allocation3], %s317
    %327 = vst [vmem:[%s326] sm:$0x1] %v325
    %v328 = vsel %vm323, 0.0, %v322
    %s329 = scalar_lea.vmem [#allocation2], 12
    %v330 = vld [vmem:[%s329] sm:$0x1]
    %v331 = vsub.f32 %v330, %v328
    %v332 = vmul.f32 %v331, 0.5
    %v333 = vadd.f32 %v328, %v332
    %vm334 = vcmp.ge.f32.partialorder %v333, 1.0
    %v335 = vsel %vm334, 1, 0
    %v336 = vcvt.s32.f32 %v335
    %s337 = scalar_lea.vmem [#allocation3], 12
    %338 = vst [vmem:[%s337] sm:$0x1] %v336
    %v339 = vsel %vm334, 0.0, %v333
    %s340 = sadd.s32 12, 1
    %s341 = scalar_lea.vmem [#allocation2], %s340
    %v342 = vld [vmem:[%s341] sm:$0x1]
    %v343 = vsub.f32 %v342, %v339
    %v344 = vmul.f32 %v343, 0.5
    %v345 = vadd.f32 %v339, %v344
    %vm346 = vcmp.ge.f32.partialorder %v345, 1.0
    %v347 = vsel %vm346, 1, 0
    %v348 = vcvt.s32.f32 %v347
    %s349 = scalar_lea.vmem [#allocation3], %s340
    %350 = vst [vmem:[%s349] sm:$0x1] %v348
    %v351 = vsel %vm346, 0.0, %v345
    %s352 = scalar_lea.vmem [#allocation2], 14
    %v353 = vld [vmem:[%s352] sm:$0x1]
    %v354 = vsub.f32 %v353, %v351
    %v355 = vmul.f32 %v354, 0.5
    %v356 = vadd.f32 %v351, %v355
    %vm357 = vcmp.ge.f32.partialorder %v356, 1.0
    %v358 = vsel %vm357, 1, 0
    %v359 = vcvt.s32.f32 %v358
    %s360 = scalar_lea.vmem [#allocation3], 14
    %361 = vst [vmem:[%s360] sm:$0x1] %v359
    %v362 = vsel %vm357, 0.0, %v356
    %s363 = sadd.s32 14, 1
    %s364 = scalar_lea.vmem [#allocation2], %s363
    %v365 = vld [vmem:[%s364] sm:$0x1]
    %v366 = vsub.f32 %v365, %v362
    %v367 = vmul.f32 %v366, 0.5
    %v368 = vadd.f32 %v362, %v367
    %vm369 = vcmp.ge.f32.partialorder %v368, 1.0
    %v370 = vsel %vm369, 1, 0
    %v371 = vcvt.s32.f32 %v370
    %s372 = scalar_lea.vmem [#allocation3], %s363
    %373 = vst [vmem:[%s372] sm:$0x1] %v371
    %v374 = vsel %vm369, 0.0, %v368
    %375 = vst [vmem:[#allocation5] sm:$0x1] %v374
    %v376 = vld [vmem:[#allocation3] sm:$0xff]
    %v377 = vld [vmem:[#allocation3 + $0x8] sm:$0xff]
    %v378 = vpack.c.bf16 %v377, %v376
    %v379 = vld [vmem:[#allocation12] sm:$0xf]
    %v380 = vld [vmem:[#allocation12 + $0x4] sm:$0xf]
    %v381 = vld [vmem:[#allocation12 + $0x8] sm:$0xf]
    %v382 = vld [vmem:[#allocation12 + $0xc] sm:$0xf]
    %v383 = vld [vmem:[#allocation12 + $0x10] sm:$0xf]
    %v384 = vld [vmem:[#allocation12 + $0x14] sm:$0xf]
    %v385 = vld [vmem:[#allocation12 + $0x18] sm:$0xf]
    %v386 = vld [vmem:[#allocation12 + $0x1c] sm:$0xf]
    %v387 = vld [vmem:[#allocation12 + $0x20] sm:$0xf]
    %v388 = vld [vmem:[#allocation12 + $0x24] sm:$0xf]
    %v389 = vld [vmem:[#allocation12 + $0x28] sm:$0xf]
    %v390 = vld [vmem:[#allocation12 + $0x2c] sm:$0xf]
    %v391 = vld [vmem:[#allocation12 + $0x30] sm:$0xf]
    %v392 = vld [vmem:[#allocation12 + $0x34] sm:$0xf]
    %v393 = vld [vmem:[#allocation12 + $0x38] sm:$0xf]
    %v394 = vld [vmem:[#allocation12 + $0x3c] sm:$0xf]
    %v395 = vld [vmem:[%s4] sm:$0x1]
    %v397 = vlaneseq
    %v398 = vshrl.u32 %v397, 7
    %v399 = vsub.s32 0, %v398
    %v400 = vrot.slane %v395, %v399
    %v418 = vunpack.c.l.b16 %v379
    %v419 = vunpack.c.l.b16 %v380
    %v420 = vunpack.c.l.b16 %v381
    %v421 = vunpack.c.l.b16 %v382
    %v422 = vunpack.c.l.b16 %v383
    %v423 = vunpack.c.l.b16 %v384
    %v424 = vunpack.c.l.b16 %v385
    %v425 = vunpack.c.l.b16 %v386
    %v426 = vunpack.c.l.b16 %v387
    %v427 = vunpack.c.l.b16 %v388
    %v428 = vunpack.c.l.b16 %v389
    %v429 = vunpack.c.l.b16 %v390
    %v430 = vunpack.c.l.b16 %v391
    %v431 = vunpack.c.l.b16 %v392
    %v432 = vunpack.c.l.b16 %v393
    %v433 = vunpack.c.l.b16 %v394
    %v434 = vpack.c.b16 %v419, %v418
    %v435 = vpack.c.b16 %v421, %v420
    %v436 = vpack.c.b16 %v423, %v422
    %v437 = vpack.c.b16 %v425, %v424
    %v438 = vpack.c.b16 %v427, %v426
    %v439 = vpack.c.b16 %v429, %v428
    %v440 = vpack.c.b16 %v431, %v430
    %v441 = vpack.c.b16 %v433, %v432
    %450 = vmatprep.subr.bf16.mxu0 0
    %451 = vmatpush1.bf16.msra.mxu0 %v434
    %452 = vmatprep.subr.bf16.mxu0 0
    %453 = vmatpush1.bf16.msra.mxu0 %v435
    %454 = vmatprep.subr.bf16.mxu0 0
    %455 = vmatpush1.bf16.msra.mxu0 %v436
    %456 = vmatprep.subr.bf16.mxu0 0
    %457 = vmatpush1.bf16.msra.mxu0 %v437
    %458 = vmatprep.subr.bf16.mxu0 0
    %459 = vmatpush1.bf16.msra.mxu0 %v438
    %460 = vmatprep.subr.bf16.mxu0 0
    %461 = vmatpush1.bf16.msra.mxu0 %v439
    %462 = vmatprep.subr.bf16.mxu0 0
    %463 = vmatpush1.bf16.msra.mxu0 %v440
    %464 = vmatprep.subr.bf16.mxu0 0
    %465 = vmatpush1.bf16.msra.mxu0 %v441
    %466 = vmatprep.subr.bf16.mxu0 0
    %467 = vmatpush1.bf16.msra.mxu0 0
    %468 = vmatprep.subr.bf16.mxu0 0
    %469 = vmatpush1.bf16.msra.mxu0 0
    %470 = vmatprep.subr.bf16.mxu0 0
    %471 = vmatpush1.bf16.msra.mxu0 0
    %472 = vmatprep.subr.bf16.mxu0 0
    %473 = vmatpush1.bf16.msra.mxu0 0
    %474 = vmatprep.subr.bf16.mxu0 0
    %475 = vmatpush1.bf16.msra.mxu0 0
    %476 = vmatprep.subr.bf16.mxu0 0
    %477 = vmatpush1.bf16.msra.mxu0 0
    %478 = vmatprep.subr.bf16.mxu0 0
    %479 = vmatpush1.bf16.msra.mxu0 0
    %480 = vmatprep.subr.bf16.mxu0 0
    %481 = vmatpush1.bf16.msra.mxu0 0
    %482 = vmatprep.mubr.bf16.mxu0 0
    %483 = vmatmul.mubr.bf16.gmra.mrb[0].mxu0 %v378
    %v484 = vpop.f32.mrb[0].mxu0
    %v485 = vadd.f32 %v400, %v484
    %v486 = vpop.f32.mrb[0].mxu0
    %v487 = vpop.f32.mrb[0].mxu0
    %v488 = vadd.f32 %v400, %v487
    %v489 = vpop.f32.mrb[0].mxu0
    %490 = vdwg.mxu0
    %491 = vst [vmem:[#allocation4] sm:$0xff] %v485
    %492 = vst [vmem:[#allocation4 + $0x8] sm:$0xff] %v488
    %v493 = vld [vmem:[#allocation6] sm:$0x1]
    %v494 = vld [vmem:[#allocation4] sm:$0x1]
    %v495 = vsub.f32 %v494, %v493
    %v496 = vmul.f32 %v495, 0.5
    %v497 = vadd.f32 %v493, %v496
    %vm498 = vcmp.ge.f32.partialorder %v497, 1.0
    %v499 = vsel %vm498, 1, 0
    %v500 = vcvt.s32.f32 %v499
    %v501 = vadd.f32 %v500, 0.0
    %v502 = vsel %vm498, 0.0, %v497
    %s503 = scalar_lea.vmem [#allocation4], %s202
    %v504 = vld [vmem:[%s503] sm:$0x1]
    %v505 = vsub.f32 %v504, %v502
    %v506 = vmul.f32 %v505, 0.5
    %v507 = vadd.f32 %v502, %v506
    %vm508 = vcmp.ge.f32.partialorder %v507, 1.0
    %v509 = vsel %vm508, 1, 0
    %v510 = vcvt.s32.f32 %v509
    %v511 = vadd.f32 %v510, 0.0
    %v512 = vsel %vm508, 0.0, %v507
    %s513 = scalar_lea.vmem [#allocation4], 2
    %v514 = vld [vmem:[%s513] sm:$0x1]
    %v515 = vsub.f32 %v514, %v512
    %v516 = vmul.f32 %v515, 0.5
    %v517 = vadd.f32 %v512, %v516
    %vm518 = vcmp.ge.f32.partialorder %v517, 1.0
    %v519 = vsel %vm518, 1, 0
    %v520 = vcvt.s32.f32 %v519
    %v521 = vadd.f32 %v501, %v520
    %v522 = vsel %vm518, 0.0, %v517
    %s523 = scalar_lea.vmem [#allocation4], %s225
    %v524 = vld [vmem:[%s523] sm:$0x1]
    %v525 = vsub.f32 %v524, %v522
    %v526 = vmul.f32 %v525, 0.5
    %v527 = vadd.f32 %v522, %v526
    %vm528 = vcmp.ge.f32.partialorder %v527, 1.0
    %v529 = vsel %vm528, 1, 0
    %v530 = vcvt.s32.f32 %v529
    %v531 = vadd.f32 %v511, %v530
    %v532 = vsel %vm528, 0.0, %v527
    %s533 = scalar_lea.vmem [#allocation4], 4
    %v534 = vld [vmem:[%s533] sm:$0x1]
    %v535 = vsub.f32 %v534, %v532
    %v536 = vmul.f32 %v535, 0.5
    %v537 = vadd.f32 %v532, %v536
    %vm538 = vcmp.ge.f32.partialorder %v537, 1.0
    %v539 = vsel %vm538, 1, 0
    %v540 = vcvt.s32.f32 %v539
    %v541 = vadd.f32 %v521, %v540
    %v542 = vsel %vm538, 0.0, %v537
    %s543 = scalar_lea.vmem [#allocation4], %s248
    %v544 = vld [vmem:[%s543] sm:$0x1]
    %v545 = vsub.f32 %v544, %v542
    %v546 = vmul.f32 %v545, 0.5
    %v547 = vadd.f32 %v542, %v546
    %vm548 = vcmp.ge.f32.partialorder %v547, 1.0
    %v549 = vsel %vm548, 1, 0
    %v550 = vcvt.s32.f32 %v549
    %v551 = vadd.f32 %v531, %v550
    %v552 = vsel %vm548, 0.0, %v547
    %s553 = scalar_lea.vmem [#allocation4], 6
    %v554 = vld [vmem:[%s553] sm:$0x1]
    %v555 = vsub.f32 %v554, %v552
    %v556 = vmul.f32 %v555, 0.5
    %v557 = vadd.f32 %v552, %v556
    %vm558 = vcmp.ge.f32.partialorder %v557, 1.0
    %v559 = vsel %vm558, 1, 0
    %v560 = vcvt.s32.f32 %v559
    %v561 = vadd.f32 %v541, %v560
    %v562 = vsel %vm558, 0.0, %v557
    %s563 = scalar_lea.vmem [#allocation4], %s271
    %v564 = vld [vmem:[%s563] sm:$0x1]
    %v565 = vsub.f32 %v564, %v562
    %v566 = vmul.f32 %v565, 0.5
    %v567 = vadd.f32 %v562, %v566
    %vm568 = vcmp.ge.f32.partialorder %v567, 1.0
    %v569 = vsel %vm568, 1, 0
    %v570 = vcvt.s32.f32 %v569
    %v571 = vadd.f32 %v551, %v570
    %v572 = vsel %vm568, 0.0, %v567
    %s573 = scalar_lea.vmem [#allocation4], 8
    %v574 = vld [vmem:[%s573] sm:$0x1]
    %v575 = vsub.f32 %v574, %v572
    %v576 = vmul.f32 %v575, 0.5
    %v577 = vadd.f32 %v572, %v576
    %vm578 = vcmp.ge.f32.partialorder %v577, 1.0
    %v579 = vsel %vm578, 1, 0
    %v580 = vcvt.s32.f32 %v579
    %v581 = vadd.f32 %v561, %v580
    %v582 = vsel %vm578, 0.0, %v577
    %s583 = scalar_lea.vmem [#allocation4], %s294
    %v584 = vld [vmem:[%s583] sm:$0x1]
    %v585 = vsub.f32 %v584, %v582
    %v586 = vmul.f32 %v585, 0.5
    %v587 = vadd.f32 %v582, %v586
    %vm588 = vcmp.ge.f32.partialorder %v587, 1.0
    %v589 = vsel %vm588, 1, 0
    %v590 = vcvt.s32.f32 %v589
    %v591 = vadd.f32 %v571, %v590
    %v592 = vsel %vm588, 0.0, %v587
    %s593 = scalar_lea.vmem [#allocation4], 10
    %v594 = vld [vmem:[%s593] sm:$0x1]
    %v595 = vsub.f32 %v594, %v592
    %v596 = vmul.f32 %v595, 0.5
    %v597 = vadd.f32 %v592, %v596
    %vm598 = vcmp.ge.f32.partialorder %v597, 1.0
    %v599 = vsel %vm598, 1, 0
    %v600 = vcvt.s32.f32 %v599
    %v601 = vadd.f32 %v581, %v600
    %v602 = vsel %vm598, 0.0, %v597
    %s603 = scalar_lea.vmem [#allocation4], %s317
    %v604 = vld [vmem:[%s603] sm:$0x1]
    %v605 = vsub.f32 %v604, %v602
    %v606 = vmul.f32 %v605, 0.5
    %v607 = vadd.f32 %v602, %v606
    %vm608 = vcmp.ge.f32.partialorder %v607, 1.0
    %v609 = vsel %vm608, 1, 0
    %v610 = vcvt.s32.f32 %v609
    %v611 = vadd.f32 %v591, %v610
    %v612 = vsel %vm608, 0.0, %v607
    %s613 = scalar_lea.vmem [#allocation4], 12
    %v614 = vld [vmem:[%s613] sm:$0x1]
    %v615 = vsub.f32 %v614, %v612
    %v616 = vmul.f32 %v615, 0.5
    %v617 = vadd.f32 %v612, %v616
    %vm618 = vcmp.ge.f32.partialorder %v617, 1.0
    %v619 = vsel %vm618, 1, 0
    %v620 = vcvt.s32.f32 %v619
    %v621 = vadd.f32 %v601, %v620
    %v622 = vsel %vm618, 0.0, %v617
    %s623 = scalar_lea.vmem [#allocation4], %s340
    %v624 = vld [vmem:[%s623] sm:$0x1]
    %v625 = vsub.f32 %v624, %v622
    %v626 = vmul.f32 %v625, 0.5
    %v627 = vadd.f32 %v622, %v626
    %vm628 = vcmp.ge.f32.partialorder %v627, 1.0
    %v629 = vsel %vm628, 1, 0
    %v630 = vcvt.s32.f32 %v629
    %v631 = vadd.f32 %v611, %v630
    %v632 = vsel %vm628, 0.0, %v627
    %s633 = scalar_lea.vmem [#allocation4], 14
    %v634 = vld [vmem:[%s633] sm:$0x1]
    %v635 = vsub.f32 %v634, %v632
    %v636 = vmul.f32 %v635, 0.5
    %v637 = vadd.f32 %v632, %v636
    %vm638 = vcmp.ge.f32.partialorder %v637, 1.0
    %v639 = vsel %vm638, 1, 0
    %v640 = vcvt.s32.f32 %v639
    %v641 = vadd.f32 %v621, %v640
    %v642 = vsel %vm638, 0.0, %v637
    %s643 = scalar_lea.vmem [#allocation4], %s363
    %v644 = vld [vmem:[%s643] sm:$0x1]
    %v645 = vsub.f32 %v644, %v642
    %v646 = vmul.f32 %v645, 0.5
    %v647 = vadd.f32 %v642, %v646
    %vm648 = vcmp.ge.f32.partialorder %v647, 1.0
    %v649 = vsel %vm648, 1, 0
    %v650 = vcvt.s32.f32 %v649
    %v651 = vadd.f32 %v631, %v650
    %v652 = vsel %vm648, 0.0, %v647
    %653 = vst [vmem:[#allocation6] sm:$0x1] %v652
    %v654 = vld [vmem:[#allocation13] sm:$0x3]
    %v656 = vlaneseq
    %v657 = vshrl.u32 %v656, 7
    %v658 = vsub.s32 0, %v657
    %v659 = vrot.slane %v651, %v658
    %vm661 = vcmask 1040384
    %v662 = vsel %vm661, %v641, %v659
    %v663 = vadd.f32 %v654, %v662
    %664 = vst [vmem:[#allocation13] sm:$0x3] %v663
    // Predicated region
    $region38: #{tpu_custom_call.1} parent=1 // pred_check
      %p665 = pneg %p63
    $region39: #{tpu_custom_call.1} parent=1 // pred_check_branch
      %667 = sbr.rel (%p665) target = $region41
    $region40: #{tpu_custom_call.1} parent=1 // pred_region
      %v668 = vld [vmem:[#allocation13] sm:$0x3]
      %v669 = vmul.f32 %v668, 0.125
      %670 = vst [vmem:[#allocation13] sm:$0x3] %v669
    $region41: #{tpu_custom_call.1} parent=1 // pred_fallthru
      _
    // Predicated region
    $region42: #{tpu_custom_call.1} parent=1 // pred_check
      _
    $region43: #{tpu_custom_call.1} parent=1 // pred_check_branch
      %672 = sbr.rel (0) target = $region45
    $region44: #{tpu_custom_call.1} parent=1 // pred_region
      %s674 = ssub.s32 32, 32
      %675 = vsyncadd [#allocation9], %s674
      %s677 = sshll.u32 [#allocation13], 4
      %s678 = int_to_ptr.vmem [resolvable:$true] %s677
      %680 = dma.vmem_to_hbm [thread:$0]  %s678, 32, %s5, [#allocation9]
    $region45: #{tpu_custom_call.1} parent=1 // pred_fallthru
      _
    // Predicated region
    $region46: #{tpu_custom_call.1} parent=1 // pred_check
      _
    $region47: #{tpu_custom_call.1} parent=1 // pred_check_branch
      %682 = sbr.rel (0) target = $region49
    $region48: #{tpu_custom_call.1} parent=1 // pred_region
      %683 = dma.done [#allocation9], 32
    $region49: #{tpu_custom_call.1} parent=1 // pred_fallthru
      _
    %684 = vsyncpa [#allocation8], 1
    %685 = vsyncpa [#allocation11], 1
    %686 = vsyncpa [#allocation9], 1

</llo_original>
